<compile_context>
chip_gen: v6e
topology: v6e:2x2x1
jax: 0.10.0
libtpu: 0.0.40
codegen_flags: <defaults>
</compile_context>

<pallas_src>
import functools

import jax
import jax.numpy as jnp
from jax.experimental import pallas as pl
from jax.experimental.pallas import tpu as pltpu


def _gnn_attn_kernel(pos_ref, feat_ref, o_ref, *, k, n_valid):
    # pos_ref:  (1, c,   Np) f32  normalized positions (keys; query cols are a sub-slice)
    # feat_ref: (1, c+1, Np) bf16 features + trailing ones-row (softmax denominator)
    # o_ref:    (1, c,   tq)
    c = o_ref.shape[1]
    tq = o_ref.shape[2]
    n_pad = pos_ref.shape[2]

    pos_t = pos_ref[0]                                        # (c, Np) f32
    feat_t = feat_ref[0]                                      # (c+1, Np) bf16

    # Query tile = sub-slice of the resident key block (no extra DMA stream,
    # no XLU transpose; starts are 128-aligned).
    q_start = pl.multiple_of(pl.program_id(1) * tq, 128)
    pos_q_t = pos_ref[0, :, pl.ds(q_start, tq)]               # (c, tq)

    # sim[q, n] = <pos[:, q], pos[:, n]> : contract the tiny channel dim on the MXU.
    sim = jax.lax.dot_general(pos_q_t, pos_t, (((0,), (0,)), ((), ())),
                              preferred_element_type=jnp.float32)   # (tq, Np)

    if n_valid < n_pad:  # static: only present when the token dim was padded
        col = jax.lax.broadcasted_iota(jnp.int32, (tq, n_pad), 1)
        sim = jnp.where(col < n_valid, sim, -jnp.inf)

    # Exact top-k threshold. The first knock-out max doubles as the softmax shift.
    m = jnp.max(sim, axis=-1, keepdims=True)                  # row max (shift)
    if k == 1:
        kth = m
    else:
        s = jnp.where(sim >= m, -jnp.inf, sim)
        for _ in range(k - 2):
            row_max = jnp.max(s, axis=-1, keepdims=True)
            s = jnp.where(s >= row_max, -jnp.inf, s)
        kth = jnp.max(s, axis=-1, keepdims=True)              # k-th largest / row

    # Fused mask + exp: un-normalized softmax weights, exactly k nonzeros / row.
    p = jnp.where(sim >= kth, jnp.exp(sim - m), jnp.float32(0.0))   # (tq, Np)

    # One bf16 MXU contraction yields both the numerator rows and (via the
    # appended ones-row) the softmax denominator, already lane-major (1, tq).
    out_aug = jax.lax.dot_general(feat_t, p.astype(feat_t.dtype),
                                  (((1,), (1,)), ((), ())),
                                  preferred_element_type=jnp.float32)  # (c+1, tq)
    inv = pl.reciprocal(out_aug[c:c + 1, :], approx=True)     # (1, tq), denom >= 1
    o_ref[0] = (out_aug[:c, :] * inv).astype(o_ref.dtype)     # deferred normalization


def _pick_tq(n_pad, b):
    """Query-row tile: multiple of 128 dividing n_pad; capped for VMEM on v7x
    and shrunk if needed so there are >= 2 parallel grid steps (2 TCs)."""
    cap = 128 if n_pad >= 16384 else 512      # keep (tq, N) temporaries inside 64 MiB
    tq = 128
    for cand in (512, 384, 256, n_pad):
        if cand <= cap and cand % 128 == 0 and n_pad % cand == 0:
            tq = max(tq, cand)
    if b * (n_pad // tq) < 2:                  # give both v7x TensorCores work
        for cand in (256, 128):
            if cand < tq and n_pad % cand == 0:
                tq = cand
                break
    return tq


def gnn_forward(x_nchw, w_t, bias, k):
    """x_nchw: (b, c, h, w); w_t: (c, 2c) (transposed Linear weight); bias: (2c,)."""
    b, c, h, w = x_nchw.shape
    n = h * w

    # ---- hoisted fc + normalize: one (b*N, c) @ (c, 2c) matmul in XLA ----
    x_flat = jnp.transpose(x_nchw, (0, 2, 3, 1)).reshape(b * n, c)
    feat_pos = x_flat @ w_t + bias[None, :]                   # (b*N, 2c)
    feat = feat_pos[:, :c].reshape(b, n, c)
    pos = feat_pos[:, c:].reshape(b, n, c)
    # F.normalize(pos, 2, -1): x / max(||x||, 1e-12) == x * rsqrt(max(ss, 1e-24))
    ss = jnp.sum(pos * pos, axis=-1, keepdims=True)
    pos = pos * jax.lax.rsqrt(jnp.maximum(ss, jnp.float32(1e-24)))

    # Tokens-in-lanes layout (b, c, N), padded up to a multiple of 128 lanes.
    n_pad = max(128, ((n + 127) // 128) * 128)
    pos_t = jnp.transpose(pos, (0, 2, 1))
    feat_t = jnp.transpose(feat, (0, 2, 1))
    if n_pad != n:
        padw = ((0, 0), (0, 0), (0, n_pad - n))
        pos_t = jnp.pad(pos_t, padw)
        feat_t = jnp.pad(feat_t, padw)
    # Append a ones-row so the same MXU contraction also yields the softmax
    # denominator; bf16 halves the operand streamed into the MXU (f32 accum).
    feat_aug_t = jnp.concatenate(
        [feat_t, jnp.ones((b, 1, n_pad), feat_t.dtype)], axis=1).astype(jnp.bfloat16)

    tq = _pick_tq(n_pad, b)
    grid = (b, n_pad // tq)

    # VMEM budget: ~5 live (tq, Np) f32 temporaries + key/feat blocks + output
    # double buffers; clamp to 64 MiB (v7x physical), floor 32 MiB (raises v5e's
    # 16 MiB default scoped limit).
    est = (5 * tq * n_pad * 4 + 2 * c * n_pad * 4 + 2 * (c + 1) * n_pad * 2
           + 4 * c * tq * 4 + (4 << 20))
    vmem_limit = int(min(max(est, 32 << 20), 64 << 20))

    kernel = functools.partial(_gnn_attn_kernel, k=k, n_valid=n)
    out_t = pl.pallas_call(
        kernel,
        out_shape=jax.ShapeDtypeStruct((b, c, n_pad), x_nchw.dtype),
        grid_spec=pltpu.PrefetchScalarGridSpec(
            num_scalar_prefetch=0,
            grid=grid,
            in_specs=[
                # key block (queries sliced from it in-kernel) — constant across qi
                pl.BlockSpec((1, c, n_pad), lambda bi, qi: (bi, 0, 0)),
                # feat + ones-row block (bf16) — constant across qi
                pl.BlockSpec((1, c + 1, n_pad), lambda bi, qi: (bi, 0, 0)),
            ],
            out_specs=pl.BlockSpec((1, c, tq), lambda bi, qi: (bi, 0, qi)),
        ),
        compiler_params=pltpu.CompilerParams(
            dimension_semantics=("parallel", "parallel"),
            vmem_limit_bytes=vmem_limit),
    )(pos_t, feat_aug_t)

    # (b, c, Np) -> drop padding -> NCHW (no output transpose needed)
    return out_t[:, :, :n].reshape(b, c, h, w)


def gnn_reference(x_nchw, w_t, bias, k):
    """Pure-JAX reference mirroring the PyTorch forward (topk + gather), f32."""
    b, c, h, w = x_nchw.shape
    n = h * w
    x = jnp.transpose(x_nchw, (0, 2, 3, 1)).reshape(b, n, c)
    feat_pos = x @ w_t + bias[None, None, :]
    feat = feat_pos[..., :c]
    pos = feat_pos[..., c:]
    pos = pos / jnp.maximum(jnp.linalg.norm(pos, axis=-1, keepdims=True), 1e-12)
    sim = pos @ jnp.swapaxes(pos, -1, -2)
    topksim, topkid = jax.lax.top_k(sim, k)                    # (b, N, k)
    topkfeat = jnp.take_along_axis(feat[:, None, :, :],
                                   topkid[..., None], axis=2)  # (b, N, k, c)
    attn = jax.nn.softmax(topksim, axis=-1)
    out = jnp.sum(attn[..., None] * topkfeat, axis=-2)         # (b, N, c)
    return jnp.transpose(out.reshape(b, h, w, c), (0, 3, 1, 2))


if __name__ == "__main__":
    # small shapes consistent with the module: b=2, c(dim)=4, h=w=16, k=4
    b, c, h, w = 2, 4, 16, 16
    k = 4

    key = jax.random.PRNGKey(0)
    kx, kw, kb = jax.random.split(key, 3)
    x = jax.random.normal(kx, (b, c, h, w), dtype=jnp.float32)

    # deterministic Linear(dim, 2*dim) params (torch weight is (2c, c); keep W^T)
    bound = 1.0 / jnp.sqrt(jnp.float32(c))
    w_torch = jax.random.uniform(kw, (2 * c, c), jnp.float32, -bound, bound)
    bias = jax.random.uniform(kb, (2 * c,), jnp.float32, -bound, bound)
    w_t = w_torch.T  # (c, 2c)

    out = gnn_forward(x, w_t, bias, k)
    out = jax.block_until_ready(out)

    ref = gnn_reference(x, w_t, bias, k)
    assert out.shape == (b, c, h, w), out.shape
    # tolerance covers the bf16 MXU path (feat & softmax weights) and the EUP
    # approximate reciprocal; top-k selection itself is done in f32.
    max_err = float(jnp.max(jnp.abs(out - ref)))
    assert jnp.allclose(out, ref, atol=1e-2, rtol=1e-2), max_err

    print("KERNEL_OK")
</pallas_src>

<mosaic_0001>
module attributes {stable_mosaic.version = 11 : i64} {
  func.func @_gnn_attn_kernel(%arg0: i32, %arg1: i32, %arg2: memref<1x4x256xf32, #tpu.memory_space<vmem>>, %arg3: memref<1x5x256xbf16, #tpu.memory_space<vmem>>, %arg4: memref<1x4x256xf32, #tpu.memory_space<vmem>>) attributes {dimension_semantics = [#tpu.dimension_semantics<parallel>, #tpu.dimension_semantics<parallel>], iteration_bounds = array<i64: 2, 1>, scalar_prefetch = 0 : i64, scratch_operands = 0 : i64, tpu.core_type = #tpu.core_type<tc>, window_params = [{transform_indices = @transform_0, window_bounds = array<i64: 1, 4, 256>}, {transform_indices = @transform_1, window_bounds = array<i64: 1, 5, 256>}, {transform_indices = @transform_2, window_bounds = array<i64: 1, 4, 256>}]} {
    %c0 = arith.constant 0 : index
    %c0_0 = arith.constant 0 : index
    %c0_1 = arith.constant 0 : index
    %0 = vector.load %arg2[%c0, %c0_0, %c0_1] : memref<1x4x256xf32, #tpu.memory_space<vmem>>, vector<1x4x256xf32>
    %1 = vector.shape_cast %0 : vector<1x4x256xf32> to vector<4x256xf32>
    %c0_2 = arith.constant 0 : index
    %c0_3 = arith.constant 0 : index
    %c0_4 = arith.constant 0 : index
    %2 = vector.load %arg3[%c0_2, %c0_3, %c0_4] : memref<1x5x256xbf16, #tpu.memory_space<vmem>>, vector<1x5x256xbf16>
    %3 = vector.shape_cast %2 : vector<1x5x256xbf16> to vector<5x256xbf16>
    %c256_i32 = arith.constant 256 : i32
    %4 = arith.muli %arg1, %c256_i32 : i32
    %5 = tpu.assume_multiple %4, 128 : i32
    %c0_5 = arith.constant 0 : index
    %c0_6 = arith.constant 0 : index
    %6 = arith.index_cast %5 : i32 to index
    %7 = vector.load %arg2[%c0_5, %c0_6, %6] : memref<1x4x256xf32, #tpu.memory_space<vmem>>, vector<1x4x256xf32>
    %8 = vector.shape_cast %7 : vector<1x4x256xf32> to vector<4x256xf32>
    %cst = arith.constant dense<0.000000e+00> : vector<256x256xf32>
    %9 = tpu.matmul %8, %1, %cst {dimension_numbers = #tpu.dot_dimension_numbers<[0], [0], [1], [1], [0, 1, 1, 1], [], []>} : vector<4x256xf32>, vector<4x256xf32>, vector<256x256xf32> -> vector<256x256xf32>
    %cst_7 = arith.constant dense<0xFF800000> : vector<256xf32>
    %10 = vector.multi_reduction <maximumf>, %9, %cst_7 [1] : vector<256x256xf32> to vector<256xf32>
    %11 = vector.shape_cast %10 : vector<256xf32> to vector<256x1xf32>
    %12 = vector.broadcast %11 : vector<256x1xf32> to vector<256x256xf32>
    %13 = arith.cmpf oge, %9, %12 : vector<256x256xf32>
    %cst_8 = arith.constant 0xFF800000 : f32
    %14 = vector.broadcast %cst_8 : f32 to vector<256x256xf32>
    %15 = arith.select %13, %14, %9 : vector<256x256xi1>, vector<256x256xf32>
    %cst_9 = arith.constant dense<0xFF800000> : vector<256xf32>
    %16 = vector.multi_reduction <maximumf>, %15, %cst_9 [1] : vector<256x256xf32> to vector<256xf32>
    %17 = vector.shape_cast %16 : vector<256xf32> to vector<256x1xf32>
    %18 = vector.broadcast %17 : vector<256x1xf32> to vector<256x256xf32>
    %19 = arith.cmpf oge, %15, %18 : vector<256x256xf32>
    %cst_10 = arith.constant 0xFF800000 : f32
    %20 = vector.broadcast %cst_10 : f32 to vector<256x256xf32>
    %21 = arith.select %19, %20, %15 : vector<256x256xi1>, vector<256x256xf32>
    %cst_11 = arith.constant dense<0xFF800000> : vector<256xf32>
    %22 = vector.multi_reduction <maximumf>, %21, %cst_11 [1] : vector<256x256xf32> to vector<256xf32>
    %23 = vector.shape_cast %22 : vector<256xf32> to vector<256x1xf32>
    %24 = vector.broadcast %23 : vector<256x1xf32> to vector<256x256xf32>
    %25 = arith.cmpf oge, %21, %24 : vector<256x256xf32>
    %cst_12 = arith.constant 0xFF800000 : f32
    %26 = vector.broadcast %cst_12 : f32 to vector<256x256xf32>
    %27 = arith.select %25, %26, %21 : vector<256x256xi1>, vector<256x256xf32>
    %cst_13 = arith.constant dense<0xFF800000> : vector<256xf32>
    %28 = vector.multi_reduction <maximumf>, %27, %cst_13 [1] : vector<256x256xf32> to vector<256xf32>
    %29 = vector.shape_cast %28 : vector<256xf32> to vector<256x1xf32>
    %30 = vector.broadcast %29 : vector<256x1xf32> to vector<256x256xf32>
    %31 = arith.cmpf oge, %9, %30 : vector<256x256xf32>
    %32 = vector.broadcast %11 : vector<256x1xf32> to vector<256x256xf32>
    %33 = arith.subf %9, %32 : vector<256x256xf32>
    %34 = math.exp %33 : vector<256x256xf32>
    %cst_14 = arith.constant 0.000000e+00 : f32
    %35 = vector.broadcast %cst_14 : f32 to vector<256x256xf32>
    %36 = arith.select %31, %34, %35 : vector<256x256xi1>, vector<256x256xf32>
    %37 = arith.truncf %36 : vector<256x256xf32> to vector<256x256xbf16>
    %cst_15 = arith.constant dense<0.000000e+00> : vector<5x256xf32>
    %38 = tpu.matmul %3, %37, %cst_15 {dimension_numbers = #tpu.dot_dimension_numbers<[1], [1], [0], [0], [0, 0, 1, 0], [], []>} : vector<5x256xbf16>, vector<256x256xbf16>, vector<5x256xf32> -> vector<5x256xf32>
    %39 = vector.extract_strided_slice %38 {offsets = [4, 0], sizes = [1, 256], strides = [1, 1]} : vector<5x256xf32> to vector<1x256xf32>
    %40 = tpu.reciprocal %39 {approx = true} : vector<1x256xf32> -> vector<1x256xf32>
    %41 = vector.extract_strided_slice %38 {offsets = [0, 0], sizes = [4, 256], strides = [1, 1]} : vector<5x256xf32> to vector<4x256xf32>
    %42 = vector.broadcast %40 : vector<1x256xf32> to vector<4x256xf32>
    %43 = arith.mulf %41, %42 : vector<4x256xf32>
    %c0_16 = arith.constant 0 : index
    %c0_17 = arith.constant 0 : index
    %c0_18 = arith.constant 0 : index
    %44 = vector.load %arg4[%c0_16, %c0_17, %c0_18] : memref<1x4x256xf32, #tpu.memory_space<vmem>>, vector<1x4x256xf32>
    %45 = vector.shape_cast %44 : vector<1x4x256xf32> to vector<4x256xf32>
    %46 = vector.shape_cast %43 : vector<4x256xf32> to vector<1x4x256xf32>
    tpu.vector_store %arg4[%c0_16, %c0_17, %c0_18], %46 {strides = array<i32>} : memref<1x4x256xf32, #tpu.memory_space<vmem>>, vector<1x4x256xf32>,
    return
  }
  func.func @transform_0(%arg0: i32, %arg1: i32) -> (i32, i32, i32) {
    %c0_i32 = arith.constant 0 : i32
    %c0_i32_0 = arith.constant 0 : i32
    %c0_i32_1 = arith.constant 0 : i32
    return %arg0, %c0_i32, %c0_i32_0 : i32, i32, i32
  }
  func.func @transform_1(%arg0: i32, %arg1: i32) -> (i32, i32, i32) {
    %c0_i32 = arith.constant 0 : i32
    %c0_i32_0 = arith.constant 0 : i32
    %c0_i32_1 = arith.constant 0 : i32
    return %arg0, %c0_i32, %c0_i32_0 : i32, i32, i32
  }
  func.func @transform_2(%arg0: i32, %arg1: i32) -> (i32, i32, i32) {
    %c0_i32 = arith.constant 0 : i32
    %c0_i32_0 = arith.constant 0 : i32
    return %arg0, %c0_i32, %arg1 : i32, i32, i32
  }
}

</mosaic_0001>

<llo_original>
// kernel: tpu_custom_call.1
$region0: #{tpu_custom_call.1}
  #allocation0 [shape = 'u32[]', space=smem, size = 0x4, offset = 0x4, fixed_abs, tag = 'smem constant byte address 0x4 - core index']
  #allocation1 [shape = 'u32[144,128]{1,0:T(1,128)}', space=vmem, size = 0x12000, scoped, tag = 'internal scratch']
  %s0 = inlined_call_operand.vmem [shape: f32[2,4,256], index: 0, kind: input, shape index: {}]
  %s1 = inlined_call_operand.vmem [shape: bf16[2,5,256], index: 1, kind: input, shape index: {}]
  %s2 = inlined_call_operand.hbm [shape: f32[2,4,256], index: 2, kind: output, shape index: {}]
  %s3 = sld [smem:[#allocation0]]
  $region41: #{tpu_custom_call.1} parent=0
    _
  %s5 = ssub.s32 1, %s3
  %s6 = scalar_select 0, %s5, %s3
  $region1: #{tpu_custom_call.1} parent=0
    #allocation2 [shape = 'u8[8192]{0}', space=vmem, size = 0x2000, scoped, tag = 'output window, operand 0']
    #allocation3 [shape = 's32[2]{0}', space=sflag, size = 0x8, scoped, tag = 'scoped memory for tpu_custom_call.1']
    %7 = vsyncpa [#allocation3], 0
    %s8 = scalar_lea.sflag [#allocation3], 1
    %9 = vsyncpa %s8, 0
    loop: start=0, step=1, limit=4
    $region2: #{tpu_custom_call.1} parent=1 // loop_pre_header
      _
    $region3: #{tpu_custom_call.1} parent=1 // loop_header
      %s11 = sphi 0, %s15
      %p12 = scmp.ge.s32.totalorder %s11, 4
      %s18 = sphi 0, %s30
      %s19 = sphi 0, %s26
      %s20 = sphi 0, %s18
      %s21 = sphi 0, %s19
      %s22 = sphi 0, %s20
      %s23 = sphi 0, %s21
      %s33 = sphi 0, %s35
      %s36 = sphi 0, %s33
      %s37 = sphi 0, %s36
      %s53 = sphi 0, %s37
      %s59 = sphi 0, %s61
      %s62 = sphi 0, %s59
      %s63 = sphi 0, %s62
      %s79 = sphi 0, %s63
      %s87 = sphi 0, %s89
      %s90 = sphi 0, %s87
      %s91 = sphi 0, %s90
      %s107 = sphi 0, %s91
    $region4: #{tpu_custom_call.1} parent=1 // loop_header_branch
      %14 = sbr.rel (%p12) target = $region8
    $region5: #{tpu_custom_call.1} parent=1 // loop_body
      %s16 = ssub.s32 %s11, 1
      %s17 = ssub.s32 %s11, 2
      %s24 = sadd.s32 1, %s19
      %p25 = scmp.ge.s32.totalorder %s24, 1
      %s26 = scalar_select %p25, 0, %s24
      %s27 = sadd.s32 1, %s18
      %s28 = scalar_select %p25, %s27, %s18
      %p29 = scmp.ge.s32.totalorder %s28, 2
      %s30 = scalar_select %p29, 0, %s28
      %s31 = ssub.s32 %s18, %s30
      %p32 = scmp.eq.s32.totalorder %s31, 0
      %s34 = sadd.s32 %s33, 1
      %s35 = scalar_select %p32, %s33, %s34
      %p38 = pneg %p32
      %p39 = scmp.eq.s32.totalorder %s11, 1
      %p40 = por %p38, %p39
      %p41 = scmp.ne.s32.totalorder %s33, %s36
      %p42 = scmp.eq.s32.totalorder %s11, 0
      %p43 = por %p41, %p42
      %p44 = scmp.ne.s32.totalorder %s33, %s36
      %p45 = scmp.eq.s32.totalorder %s16, 1
      %p46 = por %p44, %p45
      %p47 = scmp.ne.s32.totalorder %s36, %s37
      %p48 = scmp.eq.s32.totalorder %s16, 0
      %p49 = por %p47, %p48
      %p50 = scmp.ne.s32.totalorder %s36, %s37
      %p51 = scmp.eq.s32.totalorder %s17, 1
      %p52 = por %p50, %p51
      %p54 = scmp.ne.s32.totalorder %s37, %s53
      %p55 = scmp.eq.s32.totalorder %s17, 0
      %p56 = por %p54, %p55
      %s57 = ssub.s32 %s18, %s30
      %p58 = scmp.eq.s32.totalorder %s57, 0
      %s60 = sadd.s32 %s59, 1
      %s61 = scalar_select %p58, %s59, %s60
      %p64 = pneg %p58
      %p65 = scmp.eq.s32.totalorder %s11, 1
      %p66 = por %p64, %p65
      %p67 = scmp.ne.s32.totalorder %s59, %s62
      %p68 = scmp.eq.s32.totalorder %s11, 0
      %p69 = por %p67, %p68
      %p70 = scmp.ne.s32.totalorder %s59, %s62
      %p71 = scmp.eq.s32.totalorder %s16, 1
      %p72 = por %p70, %p71
      %p73 = scmp.ne.s32.totalorder %s62, %s63
      %p74 = scmp.eq.s32.totalorder %s16, 0
      %p75 = por %p73, %p74
      %p76 = scmp.ne.s32.totalorder %s62, %s63
      %p77 = scmp.eq.s32.totalorder %s17, 1
      %p78 = por %p76, %p77
      %p80 = scmp.ne.s32.totalorder %s63, %s79
      %p81 = scmp.eq.s32.totalorder %s17, 0
      %p82 = por %p80, %p81
      %s83 = ssub.s32 %s18, %s30
      %s84 = ssub.s32 %s19, %s26
      %s85 = sor.u32 %s83, %s84
      %p86 = scmp.eq.s32.totalorder %s85, 0
      %s88 = sadd.s32 %s87, 1
      %s89 = scalar_select %p86, %s87, %s88
      %p92 = pneg %p86
      %p93 = scmp.eq.s32.totalorder %s11, 1
      %p94 = por %p92, %p93
      %p95 = scmp.ne.s32.totalorder %s87, %s90
      %p96 = scmp.eq.s32.totalorder %s11, 0
      %p97 = por %p95, %p96
      %p98 = scmp.ne.s32.totalorder %s87, %s90
      %p99 = scmp.eq.s32.totalorder %s16, 1
      %p100 = por %p98, %p99
      %p101 = scmp.ne.s32.totalorder %s90, %s91
      %p102 = scmp.eq.s32.totalorder %s16, 0
      %p103 = por %p101, %p102
      %p104 = scmp.ne.s32.totalorder %s90, %s91
      %p105 = scmp.eq.s32.totalorder %s17, 1
      %p106 = por %p104, %p105
      %p108 = scmp.ne.s32.totalorder %s91, %s107
      %p109 = scmp.eq.s32.totalorder %s17, 0
      %p110 = por %p108, %p109
      %p111 = scmp.le.s32.totalorder 1, %s11
      %p112 = scmp.lt.s32.totalorder %s11, 3
      %p113 = pnand %p111, %p112
      %p114 = pneg %p113
      // Predicated region
      $region9: #{tpu_custom_call.1} parent=5 // pred_check
        _
      $region10: #{tpu_custom_call.1} parent=5 // pred_check_branch
        %116 = sbr.rel (%p113) target = $region12
      $region11: #{tpu_custom_call.1} parent=5 // pred_region
        %s117 = ssub.s32 %s11, 1
      $region12: #{tpu_custom_call.1} parent=5 // pred_fallthru
        _
      %p118 = scmp.lt.s32.totalorder %s11, 2
      // Predicated region
      $region13: #{tpu_custom_call.1} parent=5 // pred_check
        %p119 = pneg %p118
      $region14: #{tpu_custom_call.1} parent=5 // pred_check_branch
        %121 = sbr.rel (%p119) target = $region16
      $region15: #{tpu_custom_call.1} parent=5 // pred_region
        // Predicated region
        $region17: #{tpu_custom_call.1} parent=15 // pred_check
          %p122 = pneg %p43
        $region18: #{tpu_custom_call.1} parent=15 // pred_check_branch
          %124 = sbr.rel (%p122) target = $region20
        $region19: #{tpu_custom_call.1} parent=15 // pred_region
          %p125 = scmp.lt.s32.totalorder %s18, 1
          %s126 = scalar_select %p125, %s18, 1
          %s127 = smul.addr %s126, 2
          %s128 = smul.addr %s127, 4
          %s129 = scalar_lea.vmem %s0, %s128
        $region20: #{tpu_custom_call.1} parent=15 // pred_fallthru
          _
        // Predicated region
        $region21: #{tpu_custom_call.1} parent=15 // pred_check
          %p130 = pneg %p69
        $region22: #{tpu_custom_call.1} parent=15 // pred_check_branch
          %132 = sbr.rel (%p130) target = $region24
        $region23: #{tpu_custom_call.1} parent=15 // pred_region
          %p133 = scmp.lt.s32.totalorder %s18, 1
          %s134 = scalar_select %p133, %s18, 1
          %s135 = smul.addr %s134, 2
          %s136 = smul.addr %s135, 4
          %s137 = scalar_lea.vmem %s1, %s136
        $region24: #{tpu_custom_call.1} parent=15 // pred_fallthru
          _
      $region16: #{tpu_custom_call.1} parent=5 // pred_fallthru
        _
      %p138 = scmp.le.s32.totalorder 1, %s11
      %p139 = scmp.lt.s32.totalorder %s11, 3
      %p140 = pnand %p138, %p139
      %p141 = pneg %p140
      // Predicated region
      $region25: #{tpu_custom_call.1} parent=5 // pred_check
        _
      $region26: #{tpu_custom_call.1} parent=5 // pred_check_branch
        %143 = sbr.rel (%p140) target = $region28
      $region27: #{tpu_custom_call.1} parent=5 // pred_region
        %s144 = ssub.s32 %s11, 1
        %p145 = scmp.lt.s32.totalorder %s20, 1
        %s146 = scalar_select %p145, %s20, 1
        %s147 = smul.addr %s146, 2
        %s148 = smul.addr %s147, 4
        %s149 = scalar_lea.vmem %s0, %s148
        %p150 = pneg %p49
        %p151 = pneg %p46
        %p152 = scmp.lt.s32.totalorder %s20, 1
        %s153 = scalar_select %p152, %s20, 1
        %s154 = smul.addr %s153, 2
        %s155 = smul.addr %s154, 4
        %s156 = scalar_lea.vmem %s1, %s155
        %p157 = pneg %p75
        %p158 = pneg %p72
        %p159 = pneg %p103
        %p160 = pneg %p100
        %s161 = sand.u32 %s90, 1
        %s162 = scalar_lea.sflag [#allocation3], %s161
        %s163 = sand.u32 %s90, 1
        %s164 = smul.addr %s163, 8
        %s165 = scalar_lea.vmem [#allocation2], %s164
        %p166 = scmp.lt.s32.totalorder %s20, 1
        %s167 = scalar_select %p166, %s20, 1
        %s168 = smul.addr %s167, 2
        %s169 = smul.addr %s168, 4
        %s170 = scalar_lea.vmem %s0, %s169
        %p171 = scmp.lt.s32.totalorder %s20, 1
        %s172 = scalar_select %p171, %s20, 1
        %s173 = smul.addr %s172, 2
        %s174 = smul.addr %s173, 4
        %s175 = scalar_lea.vmem %s1, %s174
        %s176 = smul.u32 2, %s21
        %v177 = vld [vmem:[%s170] sm:$0xff]
        %v178 = vld [vmem:[%s175] sm:$0x77]
        %s179 = smul.u32 %s21, 256
        %s180 = sshra.s32 %s179, 7
        %s181 = sand.u32 %s179, 127
        %s182 = smul.addr %s180, 4
        %s183 = scalar_lea.vmem %s170, %s182
        %v184 = vld [vmem:[%s183] sm:$0xff]
        %v186 = vcombine.high %v184, %v184
        %188 = vxpose.xlu0.b32.start [1/16] %v184, 128
        %189 = vxpose.xlu0.b32.cont [2/16] 0.0, 128
        %190 = vxpose.xlu0.b32.cont [3/16] 0.0, 128
        %191 = vxpose.xlu0.b32.cont [4/16] 0.0, 128
        %192 = vxpose.xlu0.b32.cont [5/16] 0.0, 128
        %193 = vxpose.xlu0.b32.cont [6/16] 0.0, 128
        %194 = vxpose.xlu0.b32.cont [7/16] 0.0, 128
        %195 = vxpose.xlu0.b32.cont [8/16] 0.0, 128
        %196 = vxpose.xlu0.b32.cont [9/16] 0.0, 128
        %197 = vxpose.xlu0.b32.cont [10/16] 0.0, 128
        %198 = vxpose.xlu0.b32.cont [11/16] 0.0, 128
        %199 = vxpose.xlu0.b32.cont [12/16] 0.0, 128
        %200 = vxpose.xlu0.b32.cont [13/16] 0.0, 128
        %201 = vxpose.xlu0.b32.cont [14/16] 0.0, 128
        %202 = vxpose.xlu0.b32.cont [15/16] 0.0, 128
        %203 = vxpose.xlu0.b32.end [16/16] 0.0, 128
        %v204 = vpop.trf.xlu0
        %v205 = vpop.trf.xlu0
        %v206 = vpop.trf.xlu0
        %v207 = vpop.trf.xlu0
        %v208 = vpop.trf.xlu0
        %v209 = vpop.trf.xlu0
        %v210 = vpop.trf.xlu0
        %v211 = vpop.trf.xlu0
        %v212 = vpop.trf.xlu0
        %v213 = vpop.trf.xlu0
        %v214 = vpop.trf.xlu0
        %v215 = vpop.trf.xlu0
        %v216 = vpop.trf.xlu0
        %v217 = vpop.trf.xlu0
        %v218 = vpop.trf.xlu0
        %v219 = vpop.trf.xlu0
        %220 = vxpose.xlu0.b32.start [1/16] %v186, 128
        %221 = vxpose.xlu0.b32.cont [2/16] 0.0, 128
        %222 = vxpose.xlu0.b32.cont [3/16] 0.0, 128
        %223 = vxpose.xlu0.b32.cont [4/16] 0.0, 128
        %224 = vxpose.xlu0.b32.cont [5/16] 0.0, 128
        %225 = vxpose.xlu0.b32.cont [6/16] 0.0, 128
        %226 = vxpose.xlu0.b32.cont [7/16] 0.0, 128
        %227 = vxpose.xlu0.b32.cont [8/16] 0.0, 128
        %228 = vxpose.xlu0.b32.cont [9/16] 0.0, 128
        %229 = vxpose.xlu0.b32.cont [10/16] 0.0, 128
        %230 = vxpose.xlu0.b32.cont [11/16] 0.0, 128
        %231 = vxpose.xlu0.b32.cont [12/16] 0.0, 128
        %232 = vxpose.xlu0.b32.cont [13/16] 0.0, 128
        %233 = vxpose.xlu0.b32.cont [14/16] 0.0, 128
        %234 = vxpose.xlu0.b32.cont [15/16] 0.0, 128
        %235 = vxpose.xlu0.b32.end [16/16] 0.0, 128
        %v236 = vpop.trf.xlu0
        %v237 = vpop.trf.xlu0
        %v238 = vpop.trf.xlu0
        %v239 = vpop.trf.xlu0
        %v240 = vpop.trf.xlu0
        %v241 = vpop.trf.xlu0
        %v242 = vpop.trf.xlu0
        %v243 = vpop.trf.xlu0
        %v244 = vpop.trf.xlu0
        %v245 = vpop.trf.xlu0
        %v246 = vpop.trf.xlu0
        %v247 = vpop.trf.xlu0
        %v248 = vpop.trf.xlu0
        %v249 = vpop.trf.xlu0
        %v250 = vpop.trf.xlu0
        %v251 = vpop.trf.xlu0
        %v253 = vcombine.high %v177, %v177
        %vm254 = vcmask 31744
        %v256 = vsel %vm254, %v204, 0
        %v259 = vsel %vm254, %v205, 0
        %v262 = vsel %vm254, %v206, 0
        %v265 = vsel %vm254, %v207, 0
        %v268 = vsel %vm254, %v208, 0
        %v271 = vsel %vm254, %v209, 0
        %v274 = vsel %vm254, %v210, 0
        %v277 = vsel %vm254, %v211, 0
        %v280 = vsel %vm254, %v212, 0
        %v283 = vsel %vm254, %v213, 0
        %v286 = vsel %vm254, %v214, 0
        %v289 = vsel %vm254, %v215, 0
        %v292 = vsel %vm254, %v216, 0
        %v295 = vsel %vm254, %v217, 0
        %v298 = vsel %vm254, %v218, 0
        %v301 = vsel %vm254, %v219, 0
        %v304 = vsel %vm254, %v236, 0
        %v307 = vsel %vm254, %v237, 0
        %v310 = vsel %vm254, %v238, 0
        %v313 = vsel %vm254, %v239, 0
        %v316 = vsel %vm254, %v240, 0
        %v319 = vsel %vm254, %v241, 0
        %v322 = vsel %vm254, %v242, 0
        %v325 = vsel %vm254, %v243, 0
        %v328 = vsel %vm254, %v244, 0
        %v331 = vsel %vm254, %v245, 0
        %v334 = vsel %vm254, %v246, 0
        %v337 = vsel %vm254, %v247, 0
        %v340 = vsel %vm254, %v248, 0
        %v343 = vsel %vm254, %v249, 0
        %v346 = vsel %vm254, %v250, 0
        %v349 = vsel %vm254, %v251, 0
        %vm351 = vcmask 1043456
        %v352 = vsel %vm351, %v177, 0
        %v354 = vsel %vm351, %v253, 0
        %356 = vmatprep.subr.mxu0 0.0
        %357 = vmatpush1.msra.mxu0 0.0
        %358 = vmatprep.subr.mxu0 0.0
        %359 = vmatpush1.msra.mxu0 0.0
        %360 = vmatprep.subr.mxu0 0.0
        %361 = vmatpush1.msra.mxu0 0.0
        %362 = vmatprep.subr.mxu0 0.0
        %363 = vmatpush1.msra.mxu0 0.0
        %364 = vmatprep.subr.mxu0 0.0
        %365 = vmatpush1.msra.mxu0 0.0
        %366 = vmatprep.subr.mxu0 0.0
        %367 = vmatpush1.msra.mxu0 0.0
        %368 = vmatprep.subr.mxu0 0.0
        %369 = vmatpush1.msra.mxu0 0.0
        %370 = vmatprep.subr.mxu0 0.0
        %371 = vmatpush1.msra.mxu0 0.0
        %372 = vmatprep.subr.mxu0 0.0
        %373 = vmatpush1.msra.mxu0 0.0
        %374 = vmatprep.subr.mxu0 0.0
        %375 = vmatpush1.msra.mxu0 0.0
        %376 = vmatprep.subr.mxu0 0.0
        %377 = vmatpush1.msra.mxu0 0.0
        %378 = vmatprep.subr.mxu0 0.0
        %379 = vmatpush1.msra.mxu0 0.0
        %380 = vmatprep.subr.mxu0 0.0
        %381 = vmatpush1.msra.mxu0 0.0
        %382 = vmatprep.subr.mxu0 0.0
        %383 = vmatpush1.msra.mxu0 0.0
        %384 = vmatprep.subr.mxu0 0.0
        %385 = vmatpush1.msra.mxu0 0.0
        %386 = vmatprep.subr.mxu0 %v354
        %387 = vmatpush1.msra.mxu0 %v352
        %388 = vmatprep.subr.mxu0 0.0
        %389 = vmatpush2.msra.mxu0 0.0
        %390 = vmatprep.subr.mxu0 0.0
        %391 = vmatpush2.msra.mxu0 0.0
        %392 = vmatprep.subr.mxu0 0.0
        %393 = vmatpush2.msra.mxu0 0.0
        %394 = vmatprep.subr.mxu0 0.0
        %395 = vmatpush2.msra.mxu0 0.0
        %396 = vmatprep.subr.mxu0 0.0
        %397 = vmatpush2.msra.mxu0 0.0
        %398 = vmatprep.subr.mxu0 0.0
        %399 = vmatpush2.msra.mxu0 0.0
        %400 = vmatprep.subr.mxu0 0.0
        %401 = vmatpush2.msra.mxu0 0.0
        %402 = vmatprep.subr.mxu0 0.0
        %403 = vmatpush2.msra.mxu0 0.0
        %404 = vmatprep.subr.mxu0 0.0
        %405 = vmatpush2.msra.mxu0 0.0
        %406 = vmatprep.subr.mxu0 0.0
        %407 = vmatpush2.msra.mxu0 0.0
        %408 = vmatprep.subr.mxu0 0.0
        %409 = vmatpush2.msra.mxu0 0.0
        %410 = vmatprep.subr.mxu0 0.0
        %411 = vmatpush2.msra.mxu0 0.0
        %412 = vmatprep.subr.mxu0 0.0
        %413 = vmatpush2.msra.mxu0 0.0
        %414 = vmatprep.subr.mxu0 0.0
        %415 = vmatpush2.msra.mxu0 0.0
        %416 = vmatprep.subr.mxu0 0.0
        %417 = vmatpush2.msra.mxu0 0.0
        %418 = vmatprep.subr.mxu0 0.0
        %419 = vmatpush2.msra.mxu0 0.0
        %420 = vmatprep.mubr.f32.mxu0 0.0
        %421 = vmatmul.mubr.f32.gmra.mxu0 %v256
        %v422 = vpop.f32.mrf.mxu0
        %v423 = vadd.f32 0.0, %v422
        %v424 = vpop.f32.mrf.mxu0
        %v425 = vadd.f32 0.0, %v424
        %426 = vmatprep.mubr.f32.mxu0 0.0
        %427 = vmatmul.mubr.f32.gmra.mxu0 %v259
        %v428 = vpop.f32.mrf.mxu0
        %v429 = vadd.f32 0.0, %v428
        %v430 = vpop.f32.mrf.mxu0
        %v431 = vadd.f32 0.0, %v430
        %432 = vmatprep.mubr.f32.mxu0 0.0
        %433 = vmatmul.mubr.f32.gmra.mxu0 %v262
        %v434 = vpop.f32.mrf.mxu0
        %v435 = vadd.f32 0.0, %v434
        %v436 = vpop.f32.mrf.mxu0
        %v437 = vadd.f32 0.0, %v436
        %438 = vmatprep.mubr.f32.mxu0 0.0
        %439 = vmatmul.mubr.f32.gmra.mxu0 %v265
        %v440 = vpop.f32.mrf.mxu0
        %v441 = vadd.f32 0.0, %v440
        %v442 = vpop.f32.mrf.mxu0
        %v443 = vadd.f32 0.0, %v442
        %444 = vmatprep.mubr.f32.mxu0 0.0
        %445 = vmatmul.mubr.f32.gmra.mxu0 %v268
        %v446 = vpop.f32.mrf.mxu0
        %v447 = vadd.f32 0.0, %v446
        %v448 = vpop.f32.mrf.mxu0
        %v449 = vadd.f32 0.0, %v448
        %450 = vmatprep.mubr.f32.mxu0 0.0
        %451 = vmatmul.mubr.f32.gmra.mxu0 %v271
        %v452 = vpop.f32.mrf.mxu0
        %v453 = vadd.f32 0.0, %v452
        %v454 = vpop.f32.mrf.mxu0
        %v455 = vadd.f32 0.0, %v454
        %456 = vmatprep.mubr.f32.mxu0 0.0
        %457 = vmatmul.mubr.f32.gmra.mxu0 %v274
        %v458 = vpop.f32.mrf.mxu0
        %v459 = vadd.f32 0.0, %v458
        %v460 = vpop.f32.mrf.mxu0
        %v461 = vadd.f32 0.0, %v460
        %462 = vmatprep.mubr.f32.mxu0 0.0
        %463 = vmatmul.mubr.f32.gmra.mxu0 %v277
        %v464 = vpop.f32.mrf.mxu0
        %v465 = vadd.f32 0.0, %v464
        %v466 = vpop.f32.mrf.mxu0
        %v467 = vadd.f32 0.0, %v466
        %468 = vmatprep.mubr.f32.mxu0 0.0
        %469 = vmatmul.mubr.f32.gmra.mxu0 %v280
        %v470 = vpop.f32.mrf.mxu0
        %v471 = vadd.f32 0.0, %v470
        %v472 = vpop.f32.mrf.mxu0
        %v473 = vadd.f32 0.0, %v472
        %474 = vmatprep.mubr.f32.mxu0 0.0
        %475 = vmatmul.mubr.f32.gmra.mxu0 %v283
        %v476 = vpop.f32.mrf.mxu0
        %v477 = vadd.f32 0.0, %v476
        %v478 = vpop.f32.mrf.mxu0
        %v479 = vadd.f32 0.0, %v478
        %480 = vmatprep.mubr.f32.mxu0 0.0
        %481 = vmatmul.mubr.f32.gmra.mxu0 %v286
        %v482 = vpop.f32.mrf.mxu0
        %v483 = vadd.f32 0.0, %v482
        %v484 = vpop.f32.mrf.mxu0
        %v485 = vadd.f32 0.0, %v484
        %486 = vmatprep.mubr.f32.mxu0 0.0
        %487 = vmatmul.mubr.f32.gmra.mxu0 %v289
        %v488 = vpop.f32.mrf.mxu0
        %v489 = vadd.f32 0.0, %v488
        %v490 = vpop.f32.mrf.mxu0
        %v491 = vadd.f32 0.0, %v490
        %492 = vmatprep.mubr.f32.mxu0 0.0
        %493 = vmatmul.mubr.f32.gmra.mxu0 %v292
        %v494 = vpop.f32.mrf.mxu0
        %v495 = vadd.f32 0.0, %v494
        %v496 = vpop.f32.mrf.mxu0
        %v497 = vadd.f32 0.0, %v496
        %498 = vmatprep.mubr.f32.mxu0 0.0
        %499 = vmatmul.mubr.f32.gmra.mxu0 %v295
        %v500 = vpop.f32.mrf.mxu0
        %v501 = vadd.f32 0.0, %v500
        %v502 = vpop.f32.mrf.mxu0
        %v503 = vadd.f32 0.0, %v502
        %504 = vmatprep.mubr.f32.mxu0 0.0
        %505 = vmatmul.mubr.f32.gmra.mxu0 %v298
        %v506 = vpop.f32.mrf.mxu0
        %v507 = vadd.f32 0.0, %v506
        %v508 = vpop.f32.mrf.mxu0
        %v509 = vadd.f32 0.0, %v508
        %510 = vmatprep.mubr.f32.mxu0 0.0
        %511 = vmatmul.mubr.f32.gmra.mxu0 %v301
        %v512 = vpop.f32.mrf.mxu0
        %v513 = vadd.f32 0.0, %v512
        %v514 = vpop.f32.mrf.mxu0
        %v515 = vadd.f32 0.0, %v514
        %516 = vmatprep.mubr.f32.mxu0 0.0
        %517 = vmatmul.mubr.f32.gmra.mxu0 %v304
        %v518 = vpop.f32.mrf.mxu0
        %v519 = vadd.f32 0.0, %v518
        %v520 = vpop.f32.mrf.mxu0
        %v521 = vadd.f32 0.0, %v520
        %522 = vmatprep.mubr.f32.mxu0 0.0
        %523 = vmatmul.mubr.f32.gmra.mxu0 %v307
        %v524 = vpop.f32.mrf.mxu0
        %v525 = vadd.f32 0.0, %v524
        %v526 = vpop.f32.mrf.mxu0
        %v527 = vadd.f32 0.0, %v526
        %528 = vmatprep.mubr.f32.mxu0 0.0
        %529 = vmatmul.mubr.f32.gmra.mxu0 %v310
        %v530 = vpop.f32.mrf.mxu0
        %v531 = vadd.f32 0.0, %v530
        %v532 = vpop.f32.mrf.mxu0
        %v533 = vadd.f32 0.0, %v532
        %534 = vmatprep.mubr.f32.mxu0 0.0
        %535 = vmatmul.mubr.f32.gmra.mxu0 %v313
        %v536 = vpop.f32.mrf.mxu0
        %v537 = vadd.f32 0.0, %v536
        %v538 = vpop.f32.mrf.mxu0
        %v539 = vadd.f32 0.0, %v538
        %540 = vmatprep.mubr.f32.mxu0 0.0
        %541 = vmatmul.mubr.f32.gmra.mxu0 %v316
        %v542 = vpop.f32.mrf.mxu0
        %v543 = vadd.f32 0.0, %v542
        %v544 = vpop.f32.mrf.mxu0
        %v545 = vadd.f32 0.0, %v544
        %546 = vmatprep.mubr.f32.mxu0 0.0
        %547 = vmatmul.mubr.f32.gmra.mxu0 %v319
        %v548 = vpop.f32.mrf.mxu0
        %v549 = vadd.f32 0.0, %v548
        %v550 = vpop.f32.mrf.mxu0
        %v551 = vadd.f32 0.0, %v550
        %552 = vmatprep.mubr.f32.mxu0 0.0
        %553 = vmatmul.mubr.f32.gmra.mxu0 %v322
        %v554 = vpop.f32.mrf.mxu0
        %v555 = vadd.f32 0.0, %v554
        %v556 = vpop.f32.mrf.mxu0
        %v557 = vadd.f32 0.0, %v556
        %558 = vmatprep.mubr.f32.mxu0 0.0
        %559 = vmatmul.mubr.f32.gmra.mxu0 %v325
        %v560 = vpop.f32.mrf.mxu0
        %v561 = vadd.f32 0.0, %v560
        %v562 = vpop.f32.mrf.mxu0
        %v563 = vadd.f32 0.0, %v562
        %564 = vmatprep.mubr.f32.mxu0 0.0
        %565 = vmatmul.mubr.f32.gmra.mxu0 %v328
        %v566 = vpop.f32.mrf.mxu0
        %v567 = vadd.f32 0.0, %v566
        %v568 = vpop.f32.mrf.mxu0
        %v569 = vadd.f32 0.0, %v568
        %570 = vmatprep.mubr.f32.mxu0 0.0
        %571 = vmatmul.mubr.f32.gmra.mxu0 %v331
        %v572 = vpop.f32.mrf.mxu0
        %v573 = vadd.f32 0.0, %v572
        %v574 = vpop.f32.mrf.mxu0
        %v575 = vadd.f32 0.0, %v574
        %576 = vmatprep.mubr.f32.mxu0 0.0
        %577 = vmatmul.mubr.f32.gmra.mxu0 %v334
        %v578 = vpop.f32.mrf.mxu0
        %v579 = vadd.f32 0.0, %v578
        %v580 = vpop.f32.mrf.mxu0
        %v581 = vadd.f32 0.0, %v580
        %582 = vmatprep.mubr.f32.mxu0 0.0
        %583 = vmatmul.mubr.f32.gmra.mxu0 %v337
        %v584 = vpop.f32.mrf.mxu0
        %v585 = vadd.f32 0.0, %v584
        %v586 = vpop.f32.mrf.mxu0
        %v587 = vadd.f32 0.0, %v586
        %588 = vmatprep.mubr.f32.mxu0 0.0
        %589 = vmatmul.mubr.f32.gmra.mxu0 %v340
        %v590 = vpop.f32.mrf.mxu0
        %v591 = vadd.f32 0.0, %v590
        %v592 = vpop.f32.mrf.mxu0
        %v593 = vadd.f32 0.0, %v592
        %594 = vmatprep.mubr.f32.mxu0 0.0
        %595 = vmatmul.mubr.f32.gmra.mxu0 %v343
        %v596 = vpop.f32.mrf.mxu0
        %v597 = vadd.f32 0.0, %v596
        %v598 = vpop.f32.mrf.mxu0
        %v599 = vadd.f32 0.0, %v598
        %600 = vmatprep.mubr.f32.mxu0 0.0
        %601 = vmatmul.mubr.f32.gmra.mxu0 %v346
        %v602 = vpop.f32.mrf.mxu0
        %v603 = vadd.f32 0.0, %v602
        %v604 = vpop.f32.mrf.mxu0
        %v605 = vadd.f32 0.0, %v604
        %606 = vmatprep.mubr.f32.mxu0 0.0
        %607 = vmatmul.mubr.f32.gmra.mxu0 %v349
        %v608 = vpop.f32.mrf.mxu0
        %v609 = vadd.f32 0.0, %v608
        %v610 = vpop.f32.mrf.mxu0
        %v611 = vadd.f32 0.0, %v610
        %612 = vdwg.mxu0
        %v613 = vmax.f32 %v423, %v425
        %614 = vmax.xlane.f32.xlu0 %v613
        %v615 = vpop.xlane.xlu0 %614
        %v616 = vmax.f32 %v429, %v431
        %617 = vmax.xlane.f32.xlu0 %v616
        %v618 = vpop.xlane.xlu0 %617
        %v619 = vmax.f32 %v435, %v437
        %620 = vmax.xlane.f32.xlu0 %v619
        %v621 = vpop.xlane.xlu0 %620
        %v622 = vmax.f32 %v441, %v443
        %623 = vmax.xlane.f32.xlu0 %v622
        %v624 = vpop.xlane.xlu0 %623
        %v625 = vmax.f32 %v447, %v449
        %626 = vmax.xlane.f32.xlu0 %v625
        %v627 = vpop.xlane.xlu0 %626
        %v628 = vmax.f32 %v453, %v455
        %629 = vmax.xlane.f32.xlu0 %v628
        %v630 = vpop.xlane.xlu0 %629
        %v631 = vmax.f32 %v459, %v461
        %632 = vmax.xlane.f32.xlu0 %v631
        %v633 = vpop.xlane.xlu0 %632
        %v634 = vmax.f32 %v465, %v467
        %635 = vmax.xlane.f32.xlu0 %v634
        %v636 = vpop.xlane.xlu0 %635
        %v637 = vmax.f32 %v471, %v473
        %638 = vmax.xlane.f32.xlu0 %v637
        %v639 = vpop.xlane.xlu0 %638
        %v640 = vmax.f32 %v477, %v479
        %641 = vmax.xlane.f32.xlu0 %v640
        %v642 = vpop.xlane.xlu0 %641
        %v643 = vmax.f32 %v483, %v485
        %644 = vmax.xlane.f32.xlu0 %v643
        %v645 = vpop.xlane.xlu0 %644
        %v646 = vmax.f32 %v489, %v491
        %647 = vmax.xlane.f32.xlu0 %v646
        %v648 = vpop.xlane.xlu0 %647
        %v649 = vmax.f32 %v495, %v497
        %650 = vmax.xlane.f32.xlu0 %v649
        %v651 = vpop.xlane.xlu0 %650
        %v652 = vmax.f32 %v501, %v503
        %653 = vmax.xlane.f32.xlu0 %v652
        %v654 = vpop.xlane.xlu0 %653
        %v655 = vmax.f32 %v507, %v509
        %656 = vmax.xlane.f32.xlu0 %v655
        %v657 = vpop.xlane.xlu0 %656
        %v658 = vmax.f32 %v513, %v515
        %659 = vmax.xlane.f32.xlu0 %v658
        %v660 = vpop.xlane.xlu0 %659
        %v661 = vmax.f32 %v519, %v521
        %662 = vmax.xlane.f32.xlu0 %v661
        %v663 = vpop.xlane.xlu0 %662
        %v664 = vmax.f32 %v525, %v527
        %665 = vmax.xlane.f32.xlu0 %v664
        %v666 = vpop.xlane.xlu0 %665
        %v667 = vmax.f32 %v531, %v533
        %668 = vmax.xlane.f32.xlu0 %v667
        %v669 = vpop.xlane.xlu0 %668
        %v670 = vmax.f32 %v537, %v539
        %671 = vmax.xlane.f32.xlu0 %v670
        %v672 = vpop.xlane.xlu0 %671
        %v673 = vmax.f32 %v543, %v545
        %674 = vmax.xlane.f32.xlu0 %v673
        %v675 = vpop.xlane.xlu0 %674
        %v676 = vmax.f32 %v549, %v551
        %677 = vmax.xlane.f32.xlu0 %v676
        %v678 = vpop.xlane.xlu0 %677
        %v679 = vmax.f32 %v555, %v557
        %680 = vmax.xlane.f32.xlu0 %v679
        %v681 = vpop.xlane.xlu0 %680
        %v682 = vmax.f32 %v561, %v563
        %683 = vmax.xlane.f32.xlu0 %v682
        %v684 = vpop.xlane.xlu0 %683
        %v685 = vmax.f32 %v567, %v569
        %686 = vmax.xlane.f32.xlu0 %v685
        %v687 = vpop.xlane.xlu0 %686
        %v688 = vmax.f32 %v573, %v575
        %689 = vmax.xlane.f32.xlu0 %v688
        %v690 = vpop.xlane.xlu0 %689
        %v691 = vmax.f32 %v579, %v581
        %692 = vmax.xlane.f32.xlu0 %v691
        %v693 = vpop.xlane.xlu0 %692
        %v694 = vmax.f32 %v585, %v587
        %695 = vmax.xlane.f32.xlu0 %v694
        %v696 = vpop.xlane.xlu0 %695
        %v697 = vmax.f32 %v591, %v593
        %698 = vmax.xlane.f32.xlu0 %v697
        %v699 = vpop.xlane.xlu0 %698
        %v700 = vmax.f32 %v597, %v599
        %701 = vmax.xlane.f32.xlu0 %v700
        %v702 = vpop.xlane.xlu0 %701
        %v703 = vmax.f32 %v603, %v605
        %704 = vmax.xlane.f32.xlu0 %v703
        %v705 = vpop.xlane.xlu0 %704
        %v706 = vmax.f32 %v609, %v611
        %707 = vmax.xlane.f32.xlu0 %v706
        %v708 = vpop.xlane.xlu0 %707
        %vm709 = vcmp.ge.f32.partialorder %v423, %v615
        %vm710 = vcmp.ge.f32.partialorder %v425, %v615
        %vm711 = vcmp.ge.f32.partialorder %v429, %v618
        %vm712 = vcmp.ge.f32.partialorder %v431, %v618
        %vm713 = vcmp.ge.f32.partialorder %v435, %v621
        %vm714 = vcmp.ge.f32.partialorder %v437, %v621
        %vm715 = vcmp.ge.f32.partialorder %v441, %v624
        %vm716 = vcmp.ge.f32.partialorder %v443, %v624
        %vm717 = vcmp.ge.f32.partialorder %v447, %v627
        %vm718 = vcmp.ge.f32.partialorder %v449, %v627
        %vm719 = vcmp.ge.f32.partialorder %v453, %v630
        %vm720 = vcmp.ge.f32.partialorder %v455, %v630
        %vm721 = vcmp.ge.f32.partialorder %v459, %v633
        %vm722 = vcmp.ge.f32.partialorder %v461, %v633
        %vm723 = vcmp.ge.f32.partialorder %v465, %v636
        %vm724 = vcmp.ge.f32.partialorder %v467, %v636
        %vm725 = vcmp.ge.f32.partialorder %v471, %v639
        %vm726 = vcmp.ge.f32.partialorder %v473, %v639
        %vm727 = vcmp.ge.f32.partialorder %v477, %v642
        %vm728 = vcmp.ge.f32.partialorder %v479, %v642
        %vm729 = vcmp.ge.f32.partialorder %v483, %v645
        %vm730 = vcmp.ge.f32.partialorder %v485, %v645
        %vm731 = vcmp.ge.f32.partialorder %v489, %v648
        %vm732 = vcmp.ge.f32.partialorder %v491, %v648
        %vm733 = vcmp.ge.f32.partialorder %v495, %v651
        %vm734 = vcmp.ge.f32.partialorder %v497, %v651
        %vm735 = vcmp.ge.f32.partialorder %v501, %v654
        %vm736 = vcmp.ge.f32.partialorder %v503, %v654
        %vm737 = vcmp.ge.f32.partialorder %v507, %v657
        %vm738 = vcmp.ge.f32.partialorder %v509, %v657
        %vm739 = vcmp.ge.f32.partialorder %v513, %v660
        %vm740 = vcmp.ge.f32.partialorder %v515, %v660
        %vm741 = vcmp.ge.f32.partialorder %v519, %v663
        %vm742 = vcmp.ge.f32.partialorder %v521, %v663
        %vm743 = vcmp.ge.f32.partialorder %v525, %v666
        %vm744 = vcmp.ge.f32.partialorder %v527, %v666
        %vm745 = vcmp.ge.f32.partialorder %v531, %v669
        %vm746 = vcmp.ge.f32.partialorder %v533, %v669
        %vm747 = vcmp.ge.f32.partialorder %v537, %v672
        %vm748 = vcmp.ge.f32.partialorder %v539, %v672
        %vm749 = vcmp.ge.f32.partialorder %v543, %v675
        %vm750 = vcmp.ge.f32.partialorder %v545, %v675
        %vm751 = vcmp.ge.f32.partialorder %v549, %v678
        %vm752 = vcmp.ge.f32.partialorder %v551, %v678
        %vm753 = vcmp.ge.f32.partialorder %v555, %v681
        %vm754 = vcmp.ge.f32.partialorder %v557, %v681
        %vm755 = vcmp.ge.f32.partialorder %v561, %v684
        %vm756 = vcmp.ge.f32.partialorder %v563, %v684
        %vm757 = vcmp.ge.f32.partialorder %v567, %v687
        %vm758 = vcmp.ge.f32.partialorder %v569, %v687
        %vm759 = vcmp.ge.f32.partialorder %v573, %v690
        %vm760 = vcmp.ge.f32.partialorder %v575, %v690
        %vm761 = vcmp.ge.f32.partialorder %v579, %v693
        %vm762 = vcmp.ge.f32.partialorder %v581, %v693
        %vm763 = vcmp.ge.f32.partialorder %v585, %v696
        %vm764 = vcmp.ge.f32.partialorder %v587, %v696
        %vm765 = vcmp.ge.f32.partialorder %v591, %v699
        %vm766 = vcmp.ge.f32.partialorder %v593, %v699
        %vm767 = vcmp.ge.f32.partialorder %v597, %v702
        %vm768 = vcmp.ge.f32.partialorder %v599, %v702
        %vm769 = vcmp.ge.f32.partialorder %v603, %v705
        %vm770 = vcmp.ge.f32.partialorder %v605, %v705
        %vm771 = vcmp.ge.f32.partialorder %v609, %v708
        %vm772 = vcmp.ge.f32.partialorder %v611, %v708
        %v773 = vsel %vm709, -inf, %v423
        %v774 = vsel %vm710, -inf, %v425
        %v775 = vsel %vm711, -inf, %v429
        %v776 = vsel %vm712, -inf, %v431
        %v777 = vsel %vm713, -inf, %v435
        %v778 = vsel %vm714, -inf, %v437
        %v779 = vsel %vm715, -inf, %v441
        %v780 = vsel %vm716, -inf, %v443
        %v781 = vsel %vm717, -inf, %v447
        %v782 = vsel %vm718, -inf, %v449
        %v783 = vsel %vm719, -inf, %v453
        %v784 = vsel %vm720, -inf, %v455
        %v785 = vsel %vm721, -inf, %v459
        %v786 = vsel %vm722, -inf, %v461
        %v787 = vsel %vm723, -inf, %v465
        %v788 = vsel %vm724, -inf, %v467
        %v789 = vsel %vm725, -inf, %v471
        %v790 = vsel %vm726, -inf, %v473
        %v791 = vsel %vm727, -inf, %v477
        %v792 = vsel %vm728, -inf, %v479
        %v793 = vsel %vm729, -inf, %v483
        %v794 = vsel %vm730, -inf, %v485
        %v795 = vsel %vm731, -inf, %v489
        %v796 = vsel %vm732, -inf, %v491
        %v797 = vsel %vm733, -inf, %v495
        %v798 = vsel %vm734, -inf, %v497
        %v799 = vsel %vm735, -inf, %v501
        %v800 = vsel %vm736, -inf, %v503
        %v801 = vsel %vm737, -inf, %v507
        %v802 = vsel %vm738, -inf, %v509
        %v803 = vsel %vm739, -inf, %v513
        %v804 = vsel %vm740, -inf, %v515
        %v805 = vsel %vm741, -inf, %v519
        %v806 = vsel %vm742, -inf, %v521
        %v807 = vsel %vm743, -inf, %v525
        %v808 = vsel %vm744, -inf, %v527
        %v809 = vsel %vm745, -inf, %v531
        %v810 = vsel %vm746, -inf, %v533
        %v811 = vsel %vm747, -inf, %v537
        %v812 = vsel %vm748, -inf, %v539
        %v813 = vsel %vm749, -inf, %v543
        %v814 = vsel %vm750, -inf, %v545
        %v815 = vsel %vm751, -inf, %v549
        %v816 = vsel %vm752, -inf, %v551
        %v817 = vsel %vm753, -inf, %v555
        %v818 = vsel %vm754, -inf, %v557
        %v819 = vsel %vm755, -inf, %v561
        %v820 = vsel %vm756, -inf, %v563
        %v821 = vsel %vm757, -inf, %v567
        %v822 = vsel %vm758, -inf, %v569
        %v823 = vsel %vm759, -inf, %v573
        %v824 = vsel %vm760, -inf, %v575
        %v825 = vsel %vm761, -inf, %v579
        %v826 = vsel %vm762, -inf, %v581
        %v827 = vsel %vm763, -inf, %v585
        %v828 = vsel %vm764, -inf, %v587
        %v829 = vsel %vm765, -inf, %v591
        %v830 = vsel %vm766, -inf, %v593
        %v831 = vsel %vm767, -inf, %v597
        %v832 = vsel %vm768, -inf, %v599
        %v833 = vsel %vm769, -inf, %v603
        %v834 = vsel %vm770, -inf, %v605
        %v835 = vsel %vm771, -inf, %v609
        %v836 = vsel %vm772, -inf, %v611
        %v837 = vmax.f32 %v773, %v774
        %838 = vmax.xlane.f32.xlu0 %v837
        %v839 = vpop.xlane.xlu0 %838
        %v840 = vmax.f32 %v775, %v776
        %841 = vmax.xlane.f32.xlu0 %v840
        %v842 = vpop.xlane.xlu0 %841
        %v843 = vmax.f32 %v777, %v778
        %844 = vmax.xlane.f32.xlu0 %v843
        %v845 = vpop.xlane.xlu0 %844
        %v846 = vmax.f32 %v779, %v780
        %847 = vmax.xlane.f32.xlu0 %v846
        %v848 = vpop.xlane.xlu0 %847
        %v849 = vmax.f32 %v781, %v782
        %850 = vmax.xlane.f32.xlu0 %v849
        %v851 = vpop.xlane.xlu0 %850
        %v852 = vmax.f32 %v783, %v784
        %853 = vmax.xlane.f32.xlu0 %v852
        %v854 = vpop.xlane.xlu0 %853
        %v855 = vmax.f32 %v785, %v786
        %856 = vmax.xlane.f32.xlu0 %v855
        %v857 = vpop.xlane.xlu0 %856
        %v858 = vmax.f32 %v787, %v788
        %859 = vmax.xlane.f32.xlu0 %v858
        %v860 = vpop.xlane.xlu0 %859
        %v861 = vmax.f32 %v789, %v790
        %862 = vmax.xlane.f32.xlu0 %v861
        %v863 = vpop.xlane.xlu0 %862
        %v864 = vmax.f32 %v791, %v792
        %865 = vmax.xlane.f32.xlu0 %v864
        %v866 = vpop.xlane.xlu0 %865
        %v867 = vmax.f32 %v793, %v794
        %868 = vmax.xlane.f32.xlu0 %v867
        %v869 = vpop.xlane.xlu0 %868
        %v870 = vmax.f32 %v795, %v796
        %871 = vmax.xlane.f32.xlu0 %v870
        %v872 = vpop.xlane.xlu0 %871
        %v873 = vmax.f32 %v797, %v798
        %874 = vmax.xlane.f32.xlu0 %v873
        %v875 = vpop.xlane.xlu0 %874
        %v876 = vmax.f32 %v799, %v800
        %877 = vmax.xlane.f32.xlu0 %v876
        %v878 = vpop.xlane.xlu0 %877
        %v879 = vmax.f32 %v801, %v802
        %880 = vmax.xlane.f32.xlu0 %v879
        %v881 = vpop.xlane.xlu0 %880
        %v882 = vmax.f32 %v803, %v804
        %883 = vmax.xlane.f32.xlu0 %v882
        %v884 = vpop.xlane.xlu0 %883
        %v885 = vmax.f32 %v805, %v806
        %886 = vmax.xlane.f32.xlu0 %v885
        %v887 = vpop.xlane.xlu0 %886
        %v888 = vmax.f32 %v807, %v808
        %889 = vmax.xlane.f32.xlu0 %v888
        %v890 = vpop.xlane.xlu0 %889
        %v891 = vmax.f32 %v809, %v810
        %892 = vmax.xlane.f32.xlu0 %v891
        %v893 = vpop.xlane.xlu0 %892
        %v894 = vmax.f32 %v811, %v812
        %895 = vmax.xlane.f32.xlu0 %v894
        %v896 = vpop.xlane.xlu0 %895
        %v897 = vmax.f32 %v813, %v814
        %898 = vmax.xlane.f32.xlu0 %v897
        %v899 = vpop.xlane.xlu0 %898
        %v900 = vmax.f32 %v815, %v816
        %901 = vmax.xlane.f32.xlu0 %v900
        %v902 = vpop.xlane.xlu0 %901
        %v903 = vmax.f32 %v817, %v818
        %904 = vmax.xlane.f32.xlu0 %v903
        %v905 = vpop.xlane.xlu0 %904
        %v906 = vmax.f32 %v819, %v820
        %907 = vmax.xlane.f32.xlu0 %v906
        %v908 = vpop.xlane.xlu0 %907
        %v909 = vmax.f32 %v821, %v822
        %910 = vmax.xlane.f32.xlu0 %v909
        %v911 = vpop.xlane.xlu0 %910
        %v912 = vmax.f32 %v823, %v824
        %913 = vmax.xlane.f32.xlu0 %v912
        %v914 = vpop.xlane.xlu0 %913
        %v915 = vmax.f32 %v825, %v826
        %916 = vmax.xlane.f32.xlu0 %v915
        %v917 = vpop.xlane.xlu0 %916
        %v918 = vmax.f32 %v827, %v828
        %919 = vmax.xlane.f32.xlu0 %v918
        %v920 = vpop.xlane.xlu0 %919
        %v921 = vmax.f32 %v829, %v830
        %922 = vmax.xlane.f32.xlu0 %v921
        %v923 = vpop.xlane.xlu0 %922
        %v924 = vmax.f32 %v831, %v832
        %925 = vmax.xlane.f32.xlu0 %v924
        %v926 = vpop.xlane.xlu0 %925
        %v927 = vmax.f32 %v833, %v834
        %928 = vmax.xlane.f32.xlu0 %v927
        %v929 = vpop.xlane.xlu0 %928
        %v930 = vmax.f32 %v835, %v836
        %931 = vmax.xlane.f32.xlu0 %v930
        %v932 = vpop.xlane.xlu0 %931
        %vm933 = vcmp.ge.f32.partialorder %v773, %v839
        %vm934 = vcmp.ge.f32.partialorder %v774, %v839
        %vm935 = vcmp.ge.f32.partialorder %v775, %v842
        %vm936 = vcmp.ge.f32.partialorder %v776, %v842
        %vm937 = vcmp.ge.f32.partialorder %v777, %v845
        %vm938 = vcmp.ge.f32.partialorder %v778, %v845
        %vm939 = vcmp.ge.f32.partialorder %v779, %v848
        %vm940 = vcmp.ge.f32.partialorder %v780, %v848
        %vm941 = vcmp.ge.f32.partialorder %v781, %v851
        %vm942 = vcmp.ge.f32.partialorder %v782, %v851
        %vm943 = vcmp.ge.f32.partialorder %v783, %v854
        %vm944 = vcmp.ge.f32.partialorder %v784, %v854
        %vm945 = vcmp.ge.f32.partialorder %v785, %v857
        %vm946 = vcmp.ge.f32.partialorder %v786, %v857
        %vm947 = vcmp.ge.f32.partialorder %v787, %v860
        %vm948 = vcmp.ge.f32.partialorder %v788, %v860
        %vm949 = vcmp.ge.f32.partialorder %v789, %v863
        %vm950 = vcmp.ge.f32.partialorder %v790, %v863
        %vm951 = vcmp.ge.f32.partialorder %v791, %v866
        %vm952 = vcmp.ge.f32.partialorder %v792, %v866
        %vm953 = vcmp.ge.f32.partialorder %v793, %v869
        %vm954 = vcmp.ge.f32.partialorder %v794, %v869
        %vm955 = vcmp.ge.f32.partialorder %v795, %v872
        %vm956 = vcmp.ge.f32.partialorder %v796, %v872
        %vm957 = vcmp.ge.f32.partialorder %v797, %v875
        %vm958 = vcmp.ge.f32.partialorder %v798, %v875
        %vm959 = vcmp.ge.f32.partialorder %v799, %v878
        %vm960 = vcmp.ge.f32.partialorder %v800, %v878
        %vm961 = vcmp.ge.f32.partialorder %v801, %v881
        %vm962 = vcmp.ge.f32.partialorder %v802, %v881
        %vm963 = vcmp.ge.f32.partialorder %v803, %v884
        %vm964 = vcmp.ge.f32.partialorder %v804, %v884
        %vm965 = vcmp.ge.f32.partialorder %v805, %v887
        %vm966 = vcmp.ge.f32.partialorder %v806, %v887
        %vm967 = vcmp.ge.f32.partialorder %v807, %v890
        %vm968 = vcmp.ge.f32.partialorder %v808, %v890
        %vm969 = vcmp.ge.f32.partialorder %v809, %v893
        %vm970 = vcmp.ge.f32.partialorder %v810, %v893
        %vm971 = vcmp.ge.f32.partialorder %v811, %v896
        %vm972 = vcmp.ge.f32.partialorder %v812, %v896
        %vm973 = vcmp.ge.f32.partialorder %v813, %v899
        %vm974 = vcmp.ge.f32.partialorder %v814, %v899
        %vm975 = vcmp.ge.f32.partialorder %v815, %v902
        %vm976 = vcmp.ge.f32.partialorder %v816, %v902
        %vm977 = vcmp.ge.f32.partialorder %v817, %v905
        %vm978 = vcmp.ge.f32.partialorder %v818, %v905
        %vm979 = vcmp.ge.f32.partialorder %v819, %v908
        %vm980 = vcmp.ge.f32.partialorder %v820, %v908
        %vm981 = vcmp.ge.f32.partialorder %v821, %v911
        %vm982 = vcmp.ge.f32.partialorder %v822, %v911
        %vm983 = vcmp.ge.f32.partialorder %v823, %v914
        %vm984 = vcmp.ge.f32.partialorder %v824, %v914
        %vm985 = vcmp.ge.f32.partialorder %v825, %v917
        %vm986 = vcmp.ge.f32.partialorder %v826, %v917
        %vm987 = vcmp.ge.f32.partialorder %v827, %v920
        %vm988 = vcmp.ge.f32.partialorder %v828, %v920
        %vm989 = vcmp.ge.f32.partialorder %v829, %v923
        %vm990 = vcmp.ge.f32.partialorder %v830, %v923
        %vm991 = vcmp.ge.f32.partialorder %v831, %v926
        %vm992 = vcmp.ge.f32.partialorder %v832, %v926
        %vm993 = vcmp.ge.f32.partialorder %v833, %v929
        %vm994 = vcmp.ge.f32.partialorder %v834, %v929
        %vm995 = vcmp.ge.f32.partialorder %v835, %v932
        %vm996 = vcmp.ge.f32.partialorder %v836, %v932
        %v997 = vsel %vm933, -inf, %v773
        %v998 = vsel %vm934, -inf, %v774
        %v999 = vsel %vm935, -inf, %v775
        %v1000 = vsel %vm936, -inf, %v776
        %v1001 = vsel %vm937, -inf, %v777
        %v1002 = vsel %vm938, -inf, %v778
        %v1003 = vsel %vm939, -inf, %v779
        %v1004 = vsel %vm940, -inf, %v780
        %v1005 = vsel %vm941, -inf, %v781
        %v1006 = vsel %vm942, -inf, %v782
        %v1007 = vsel %vm943, -inf, %v783
        %v1008 = vsel %vm944, -inf, %v784
        %v1009 = vsel %vm945, -inf, %v785
        %v1010 = vsel %vm946, -inf, %v786
        %v1011 = vsel %vm947, -inf, %v787
        %v1012 = vsel %vm948, -inf, %v788
        %v1013 = vsel %vm949, -inf, %v789
        %v1014 = vsel %vm950, -inf, %v790
        %v1015 = vsel %vm951, -inf, %v791
        %v1016 = vsel %vm952, -inf, %v792
        %v1017 = vsel %vm953, -inf, %v793
        %v1018 = vsel %vm954, -inf, %v794
        %v1019 = vsel %vm955, -inf, %v795
        %v1020 = vsel %vm956, -inf, %v796
        %v1021 = vsel %vm957, -inf, %v797
        %v1022 = vsel %vm958, -inf, %v798
        %v1023 = vsel %vm959, -inf, %v799
        %v1024 = vsel %vm960, -inf, %v800
        %v1025 = vsel %vm961, -inf, %v801
        %v1026 = vsel %vm962, -inf, %v802
        %v1027 = vsel %vm963, -inf, %v803
        %v1028 = vsel %vm964, -inf, %v804
        %v1029 = vsel %vm965, -inf, %v805
        %v1030 = vsel %vm966, -inf, %v806
        %v1031 = vsel %vm967, -inf, %v807
        %v1032 = vsel %vm968, -inf, %v808
        %v1033 = vsel %vm969, -inf, %v809
        %v1034 = vsel %vm970, -inf, %v810
        %v1035 = vsel %vm971, -inf, %v811
        %v1036 = vsel %vm972, -inf, %v812
        %v1037 = vsel %vm973, -inf, %v813
        %v1038 = vsel %vm974, -inf, %v814
        %v1039 = vsel %vm975, -inf, %v815
        %v1040 = vsel %vm976, -inf, %v816
        %v1041 = vsel %vm977, -inf, %v817
        %v1042 = vsel %vm978, -inf, %v818
        %v1043 = vsel %vm979, -inf, %v819
        %v1044 = vsel %vm980, -inf, %v820
        %v1045 = vsel %vm981, -inf, %v821
        %v1046 = vsel %vm982, -inf, %v822
        %v1047 = vsel %vm983, -inf, %v823
        %v1048 = vsel %vm984, -inf, %v824
        %v1049 = vsel %vm985, -inf, %v825
        %v1050 = vsel %vm986, -inf, %v826
        %v1051 = vsel %vm987, -inf, %v827
        %v1052 = vsel %vm988, -inf, %v828
        %v1053 = vsel %vm989, -inf, %v829
        %v1054 = vsel %vm990, -inf, %v830
        %v1055 = vsel %vm991, -inf, %v831
        %v1056 = vsel %vm992, -inf, %v832
        %v1057 = vsel %vm993, -inf, %v833
        %v1058 = vsel %vm994, -inf, %v834
        %v1059 = vsel %vm995, -inf, %v835
        %v1060 = vsel %vm996, -inf, %v836
        %v1061 = vmax.f32 %v997, %v998
        %1062 = vmax.xlane.f32.xlu0 %v1061
        %v1063 = vpop.xlane.xlu0 %1062
        %v1064 = vmax.f32 %v999, %v1000
        %1065 = vmax.xlane.f32.xlu0 %v1064
        %v1066 = vpop.xlane.xlu0 %1065
        %v1067 = vmax.f32 %v1001, %v1002
        %1068 = vmax.xlane.f32.xlu0 %v1067
        %v1069 = vpop.xlane.xlu0 %1068
        %v1070 = vmax.f32 %v1003, %v1004
        %1071 = vmax.xlane.f32.xlu0 %v1070
        %v1072 = vpop.xlane.xlu0 %1071
        %v1073 = vmax.f32 %v1005, %v1006
        %1074 = vmax.xlane.f32.xlu0 %v1073
        %v1075 = vpop.xlane.xlu0 %1074
        %v1076 = vmax.f32 %v1007, %v1008
        %1077 = vmax.xlane.f32.xlu0 %v1076
        %v1078 = vpop.xlane.xlu0 %1077
        %v1079 = vmax.f32 %v1009, %v1010
        %1080 = vmax.xlane.f32.xlu0 %v1079
        %v1081 = vpop.xlane.xlu0 %1080
        %v1082 = vmax.f32 %v1011, %v1012
        %1083 = vmax.xlane.f32.xlu0 %v1082
        %v1084 = vpop.xlane.xlu0 %1083
        %v1085 = vmax.f32 %v1013, %v1014
        %1086 = vmax.xlane.f32.xlu0 %v1085
        %v1087 = vpop.xlane.xlu0 %1086
        %v1088 = vmax.f32 %v1015, %v1016
        %1089 = vmax.xlane.f32.xlu0 %v1088
        %v1090 = vpop.xlane.xlu0 %1089
        %v1091 = vmax.f32 %v1017, %v1018
        %1092 = vmax.xlane.f32.xlu0 %v1091
        %v1093 = vpop.xlane.xlu0 %1092
        %v1094 = vmax.f32 %v1019, %v1020
        %1095 = vmax.xlane.f32.xlu0 %v1094
        %v1096 = vpop.xlane.xlu0 %1095
        %v1097 = vmax.f32 %v1021, %v1022
        %1098 = vmax.xlane.f32.xlu0 %v1097
        %v1099 = vpop.xlane.xlu0 %1098
        %v1100 = vmax.f32 %v1023, %v1024
        %1101 = vmax.xlane.f32.xlu0 %v1100
        %v1102 = vpop.xlane.xlu0 %1101
        %v1103 = vmax.f32 %v1025, %v1026
        %1104 = vmax.xlane.f32.xlu0 %v1103
        %v1105 = vpop.xlane.xlu0 %1104
        %v1106 = vmax.f32 %v1027, %v1028
        %1107 = vmax.xlane.f32.xlu0 %v1106
        %v1108 = vpop.xlane.xlu0 %1107
        %v1109 = vmax.f32 %v1029, %v1030
        %1110 = vmax.xlane.f32.xlu0 %v1109
        %v1111 = vpop.xlane.xlu0 %1110
        %v1112 = vmax.f32 %v1031, %v1032
        %1113 = vmax.xlane.f32.xlu0 %v1112
        %v1114 = vpop.xlane.xlu0 %1113
        %v1115 = vmax.f32 %v1033, %v1034
        %1116 = vmax.xlane.f32.xlu0 %v1115
        %v1117 = vpop.xlane.xlu0 %1116
        %v1118 = vmax.f32 %v1035, %v1036
        %1119 = vmax.xlane.f32.xlu0 %v1118
        %v1120 = vpop.xlane.xlu0 %1119
        %v1121 = vmax.f32 %v1037, %v1038
        %1122 = vmax.xlane.f32.xlu0 %v1121
        %v1123 = vpop.xlane.xlu0 %1122
        %v1124 = vmax.f32 %v1039, %v1040
        %1125 = vmax.xlane.f32.xlu0 %v1124
        %v1126 = vpop.xlane.xlu0 %1125
        %v1127 = vmax.f32 %v1041, %v1042
        %1128 = vmax.xlane.f32.xlu0 %v1127
        %v1129 = vpop.xlane.xlu0 %1128
        %v1130 = vmax.f32 %v1043, %v1044
        %1131 = vmax.xlane.f32.xlu0 %v1130
        %v1132 = vpop.xlane.xlu0 %1131
        %v1133 = vmax.f32 %v1045, %v1046
        %1134 = vmax.xlane.f32.xlu0 %v1133
        %v1135 = vpop.xlane.xlu0 %1134
        %v1136 = vmax.f32 %v1047, %v1048
        %1137 = vmax.xlane.f32.xlu0 %v1136
        %v1138 = vpop.xlane.xlu0 %1137
        %v1139 = vmax.f32 %v1049, %v1050
        %1140 = vmax.xlane.f32.xlu0 %v1139
        %v1141 = vpop.xlane.xlu0 %1140
        %v1142 = vmax.f32 %v1051, %v1052
        %1143 = vmax.xlane.f32.xlu0 %v1142
        %v1144 = vpop.xlane.xlu0 %1143
        %v1145 = vmax.f32 %v1053, %v1054
        %1146 = vmax.xlane.f32.xlu0 %v1145
        %v1147 = vpop.xlane.xlu0 %1146
        %v1148 = vmax.f32 %v1055, %v1056
        %1149 = vmax.xlane.f32.xlu0 %v1148
        %v1150 = vpop.xlane.xlu0 %1149
        %v1151 = vmax.f32 %v1057, %v1058
        %1152 = vmax.xlane.f32.xlu0 %v1151
        %v1153 = vpop.xlane.xlu0 %1152
        %v1154 = vmax.f32 %v1059, %v1060
        %1155 = vmax.xlane.f32.xlu0 %v1154
        %v1156 = vpop.xlane.xlu0 %1155
        %vm1157 = vcmp.ge.f32.partialorder %v997, %v1063
        %vm1158 = vcmp.ge.f32.partialorder %v998, %v1063
        %vm1159 = vcmp.ge.f32.partialorder %v999, %v1066
        %vm1160 = vcmp.ge.f32.partialorder %v1000, %v1066
        %vm1161 = vcmp.ge.f32.partialorder %v1001, %v1069
        %vm1162 = vcmp.ge.f32.partialorder %v1002, %v1069
        %vm1163 = vcmp.ge.f32.partialorder %v1003, %v1072
        %vm1164 = vcmp.ge.f32.partialorder %v1004, %v1072
        %vm1165 = vcmp.ge.f32.partialorder %v1005, %v1075
        %vm1166 = vcmp.ge.f32.partialorder %v1006, %v1075
        %vm1167 = vcmp.ge.f32.partialorder %v1007, %v1078
        %vm1168 = vcmp.ge.f32.partialorder %v1008, %v1078
        %vm1169 = vcmp.ge.f32.partialorder %v1009, %v1081
        %vm1170 = vcmp.ge.f32.partialorder %v1010, %v1081
        %vm1171 = vcmp.ge.f32.partialorder %v1011, %v1084
        %vm1172 = vcmp.ge.f32.partialorder %v1012, %v1084
        %vm1173 = vcmp.ge.f32.partialorder %v1013, %v1087
        %vm1174 = vcmp.ge.f32.partialorder %v1014, %v1087
        %vm1175 = vcmp.ge.f32.partialorder %v1015, %v1090
        %vm1176 = vcmp.ge.f32.partialorder %v1016, %v1090
        %vm1177 = vcmp.ge.f32.partialorder %v1017, %v1093
        %vm1178 = vcmp.ge.f32.partialorder %v1018, %v1093
        %vm1179 = vcmp.ge.f32.partialorder %v1019, %v1096
        %vm1180 = vcmp.ge.f32.partialorder %v1020, %v1096
        %vm1181 = vcmp.ge.f32.partialorder %v1021, %v1099
        %vm1182 = vcmp.ge.f32.partialorder %v1022, %v1099
        %vm1183 = vcmp.ge.f32.partialorder %v1023, %v1102
        %vm1184 = vcmp.ge.f32.partialorder %v1024, %v1102
        %vm1185 = vcmp.ge.f32.partialorder %v1025, %v1105
        %vm1186 = vcmp.ge.f32.partialorder %v1026, %v1105
        %vm1187 = vcmp.ge.f32.partialorder %v1027, %v1108
        %vm1188 = vcmp.ge.f32.partialorder %v1028, %v1108
        %vm1189 = vcmp.ge.f32.partialorder %v1029, %v1111
        %vm1190 = vcmp.ge.f32.partialorder %v1030, %v1111
        %vm1191 = vcmp.ge.f32.partialorder %v1031, %v1114
        %vm1192 = vcmp.ge.f32.partialorder %v1032, %v1114
        %vm1193 = vcmp.ge.f32.partialorder %v1033, %v1117
        %vm1194 = vcmp.ge.f32.partialorder %v1034, %v1117
        %vm1195 = vcmp.ge.f32.partialorder %v1035, %v1120
        %vm1196 = vcmp.ge.f32.partialorder %v1036, %v1120
        %vm1197 = vcmp.ge.f32.partialorder %v1037, %v1123
        %vm1198 = vcmp.ge.f32.partialorder %v1038, %v1123
        %vm1199 = vcmp.ge.f32.partialorder %v1039, %v1126
        %vm1200 = vcmp.ge.f32.partialorder %v1040, %v1126
        %vm1201 = vcmp.ge.f32.partialorder %v1041, %v1129
        %vm1202 = vcmp.ge.f32.partialorder %v1042, %v1129
        %vm1203 = vcmp.ge.f32.partialorder %v1043, %v1132
        %vm1204 = vcmp.ge.f32.partialorder %v1044, %v1132
        %vm1205 = vcmp.ge.f32.partialorder %v1045, %v1135
        %vm1206 = vcmp.ge.f32.partialorder %v1046, %v1135
        %vm1207 = vcmp.ge.f32.partialorder %v1047, %v1138
        %vm1208 = vcmp.ge.f32.partialorder %v1048, %v1138
        %vm1209 = vcmp.ge.f32.partialorder %v1049, %v1141
        %vm1210 = vcmp.ge.f32.partialorder %v1050, %v1141
        %vm1211 = vcmp.ge.f32.partialorder %v1051, %v1144
        %vm1212 = vcmp.ge.f32.partialorder %v1052, %v1144
        %vm1213 = vcmp.ge.f32.partialorder %v1053, %v1147
        %vm1214 = vcmp.ge.f32.partialorder %v1054, %v1147
        %vm1215 = vcmp.ge.f32.partialorder %v1055, %v1150
        %vm1216 = vcmp.ge.f32.partialorder %v1056, %v1150
        %vm1217 = vcmp.ge.f32.partialorder %v1057, %v1153
        %vm1218 = vcmp.ge.f32.partialorder %v1058, %v1153
        %vm1219 = vcmp.ge.f32.partialorder %v1059, %v1156
        %vm1220 = vcmp.ge.f32.partialorder %v1060, %v1156
        %v1221 = vsel %vm1157, -inf, %v997
        %v1222 = vsel %vm1158, -inf, %v998
        %v1223 = vsel %vm1159, -inf, %v999
        %v1224 = vsel %vm1160, -inf, %v1000
        %v1225 = vsel %vm1161, -inf, %v1001
        %v1226 = vsel %vm1162, -inf, %v1002
        %v1227 = vsel %vm1163, -inf, %v1003
        %v1228 = vsel %vm1164, -inf, %v1004
        %v1229 = vsel %vm1165, -inf, %v1005
        %v1230 = vsel %vm1166, -inf, %v1006
        %v1231 = vsel %vm1167, -inf, %v1007
        %v1232 = vsel %vm1168, -inf, %v1008
        %v1233 = vsel %vm1169, -inf, %v1009
        %v1234 = vsel %vm1170, -inf, %v1010
        %v1235 = vsel %vm1171, -inf, %v1011
        %v1236 = vsel %vm1172, -inf, %v1012
        %v1237 = vsel %vm1173, -inf, %v1013
        %v1238 = vsel %vm1174, -inf, %v1014
        %v1239 = vsel %vm1175, -inf, %v1015
        %v1240 = vsel %vm1176, -inf, %v1016
        %v1241 = vsel %vm1177, -inf, %v1017
        %v1242 = vsel %vm1178, -inf, %v1018
        %v1243 = vsel %vm1179, -inf, %v1019
        %v1244 = vsel %vm1180, -inf, %v1020
        %v1245 = vsel %vm1181, -inf, %v1021
        %v1246 = vsel %vm1182, -inf, %v1022
        %v1247 = vsel %vm1183, -inf, %v1023
        %v1248 = vsel %vm1184, -inf, %v1024
        %v1249 = vsel %vm1185, -inf, %v1025
        %v1250 = vsel %vm1186, -inf, %v1026
        %v1251 = vsel %vm1187, -inf, %v1027
        %v1252 = vsel %vm1188, -inf, %v1028
        %v1253 = vsel %vm1189, -inf, %v1029
        %v1254 = vsel %vm1190, -inf, %v1030
        %v1255 = vsel %vm1191, -inf, %v1031
        %v1256 = vsel %vm1192, -inf, %v1032
        %v1257 = vsel %vm1193, -inf, %v1033
        %v1258 = vsel %vm1194, -inf, %v1034
        %v1259 = vsel %vm1195, -inf, %v1035
        %v1260 = vsel %vm1196, -inf, %v1036
        %v1261 = vsel %vm1197, -inf, %v1037
        %v1262 = vsel %vm1198, -inf, %v1038
        %v1263 = vsel %vm1199, -inf, %v1039
        %v1264 = vsel %vm1200, -inf, %v1040
        %v1265 = vsel %vm1201, -inf, %v1041
        %v1266 = vsel %vm1202, -inf, %v1042
        %v1267 = vsel %vm1203, -inf, %v1043
        %v1268 = vsel %vm1204, -inf, %v1044
        %v1269 = vsel %vm1205, -inf, %v1045
        %v1270 = vsel %vm1206, -inf, %v1046
        %v1271 = vsel %vm1207, -inf, %v1047
        %v1272 = vsel %vm1208, -inf, %v1048
        %v1273 = vsel %vm1209, -inf, %v1049
        %v1274 = vsel %vm1210, -inf, %v1050
        %v1275 = vsel %vm1211, -inf, %v1051
        %v1276 = vsel %vm1212, -inf, %v1052
        %v1277 = vsel %vm1213, -inf, %v1053
        %v1278 = vsel %vm1214, -inf, %v1054
        %v1279 = vsel %vm1215, -inf, %v1055
        %v1280 = vsel %vm1216, -inf, %v1056
        %v1281 = vsel %vm1217, -inf, %v1057
        %v1282 = vsel %vm1218, -inf, %v1058
        %v1283 = vsel %vm1219, -inf, %v1059
        %v1284 = vsel %vm1220, -inf, %v1060
        %v1285 = vmax.f32 %v1221, %v1222
        %1286 = vmax.xlane.f32.xlu0 %v1285
        %v1287 = vpop.xlane.xlu0 %1286
        %v1288 = vmax.f32 %v1223, %v1224
        %1289 = vmax.xlane.f32.xlu0 %v1288
        %v1290 = vpop.xlane.xlu0 %1289
        %v1291 = vmax.f32 %v1225, %v1226
        %1292 = vmax.xlane.f32.xlu0 %v1291
        %v1293 = vpop.xlane.xlu0 %1292
        %v1294 = vmax.f32 %v1227, %v1228
        %1295 = vmax.xlane.f32.xlu0 %v1294
        %v1296 = vpop.xlane.xlu0 %1295
        %v1297 = vmax.f32 %v1229, %v1230
        %1298 = vmax.xlane.f32.xlu0 %v1297
        %v1299 = vpop.xlane.xlu0 %1298
        %v1300 = vmax.f32 %v1231, %v1232
        %1301 = vmax.xlane.f32.xlu0 %v1300
        %v1302 = vpop.xlane.xlu0 %1301
        %v1303 = vmax.f32 %v1233, %v1234
        %1304 = vmax.xlane.f32.xlu0 %v1303
        %v1305 = vpop.xlane.xlu0 %1304
        %v1306 = vmax.f32 %v1235, %v1236
        %1307 = vmax.xlane.f32.xlu0 %v1306
        %v1308 = vpop.xlane.xlu0 %1307
        %v1309 = vmax.f32 %v1237, %v1238
        %1310 = vmax.xlane.f32.xlu0 %v1309
        %v1311 = vpop.xlane.xlu0 %1310
        %v1312 = vmax.f32 %v1239, %v1240
        %1313 = vmax.xlane.f32.xlu0 %v1312
        %v1314 = vpop.xlane.xlu0 %1313
        %v1315 = vmax.f32 %v1241, %v1242
        %1316 = vmax.xlane.f32.xlu0 %v1315
        %v1317 = vpop.xlane.xlu0 %1316
        %v1318 = vmax.f32 %v1243, %v1244
        %1319 = vmax.xlane.f32.xlu0 %v1318
        %v1320 = vpop.xlane.xlu0 %1319
        %v1321 = vmax.f32 %v1245, %v1246
        %1322 = vmax.xlane.f32.xlu0 %v1321
        %v1323 = vpop.xlane.xlu0 %1322
        %v1324 = vmax.f32 %v1247, %v1248
        %1325 = vmax.xlane.f32.xlu0 %v1324
        %v1326 = vpop.xlane.xlu0 %1325
        %v1327 = vmax.f32 %v1249, %v1250
        %1328 = vmax.xlane.f32.xlu0 %v1327
        %v1329 = vpop.xlane.xlu0 %1328
        %v1330 = vmax.f32 %v1251, %v1252
        %1331 = vmax.xlane.f32.xlu0 %v1330
        %v1332 = vpop.xlane.xlu0 %1331
        %v1333 = vmax.f32 %v1253, %v1254
        %1334 = vmax.xlane.f32.xlu0 %v1333
        %v1335 = vpop.xlane.xlu0 %1334
        %v1336 = vmax.f32 %v1255, %v1256
        %1337 = vmax.xlane.f32.xlu0 %v1336
        %v1338 = vpop.xlane.xlu0 %1337
        %v1339 = vmax.f32 %v1257, %v1258
        %1340 = vmax.xlane.f32.xlu0 %v1339
        %v1341 = vpop.xlane.xlu0 %1340
        %v1342 = vmax.f32 %v1259, %v1260
        %1343 = vmax.xlane.f32.xlu0 %v1342
        %v1344 = vpop.xlane.xlu0 %1343
        %v1345 = vmax.f32 %v1261, %v1262
        %1346 = vmax.xlane.f32.xlu0 %v1345
        %v1347 = vpop.xlane.xlu0 %1346
        %v1348 = vmax.f32 %v1263, %v1264
        %1349 = vmax.xlane.f32.xlu0 %v1348
        %v1350 = vpop.xlane.xlu0 %1349
        %v1351 = vmax.f32 %v1265, %v1266
        %1352 = vmax.xlane.f32.xlu0 %v1351
        %v1353 = vpop.xlane.xlu0 %1352
        %v1354 = vmax.f32 %v1267, %v1268
        %1355 = vmax.xlane.f32.xlu0 %v1354
        %v1356 = vpop.xlane.xlu0 %1355
        %v1357 = vmax.f32 %v1269, %v1270
        %1358 = vmax.xlane.f32.xlu0 %v1357
        %v1359 = vpop.xlane.xlu0 %1358
        %v1360 = vmax.f32 %v1271, %v1272
        %1361 = vmax.xlane.f32.xlu0 %v1360
        %v1362 = vpop.xlane.xlu0 %1361
        %v1363 = vmax.f32 %v1273, %v1274
        %1364 = vmax.xlane.f32.xlu0 %v1363
        %v1365 = vpop.xlane.xlu0 %1364
        %v1366 = vmax.f32 %v1275, %v1276
        %1367 = vmax.xlane.f32.xlu0 %v1366
        %v1368 = vpop.xlane.xlu0 %1367
        %v1369 = vmax.f32 %v1277, %v1278
        %1370 = vmax.xlane.f32.xlu0 %v1369
        %v1371 = vpop.xlane.xlu0 %1370
        %v1372 = vmax.f32 %v1279, %v1280
        %1373 = vmax.xlane.f32.xlu0 %v1372
        %v1374 = vpop.xlane.xlu0 %1373
        %v1375 = vmax.f32 %v1281, %v1282
        %1376 = vmax.xlane.f32.xlu0 %v1375
        %v1377 = vpop.xlane.xlu0 %1376
        %v1378 = vmax.f32 %v1283, %v1284
        %1379 = vmax.xlane.f32.xlu0 %v1378
        %v1380 = vpop.xlane.xlu0 %1379
        %vm1381 = vcmp.ge.f32.partialorder %v423, %v1287
        %vm1382 = vcmp.ge.f32.partialorder %v425, %v1287
        %vm1383 = vcmp.ge.f32.partialorder %v429, %v1290
        %vm1384 = vcmp.ge.f32.partialorder %v431, %v1290
        %vm1385 = vcmp.ge.f32.partialorder %v435, %v1293
        %vm1386 = vcmp.ge.f32.partialorder %v437, %v1293
        %vm1387 = vcmp.ge.f32.partialorder %v441, %v1296
        %vm1388 = vcmp.ge.f32.partialorder %v443, %v1296
        %vm1389 = vcmp.ge.f32.partialorder %v447, %v1299
        %vm1390 = vcmp.ge.f32.partialorder %v449, %v1299
        %vm1391 = vcmp.ge.f32.partialorder %v453, %v1302
        %vm1392 = vcmp.ge.f32.partialorder %v455, %v1302
        %vm1393 = vcmp.ge.f32.partialorder %v459, %v1305
        %vm1394 = vcmp.ge.f32.partialorder %v461, %v1305
        %vm1395 = vcmp.ge.f32.partialorder %v465, %v1308
        %vm1396 = vcmp.ge.f32.partialorder %v467, %v1308
        %vm1397 = vcmp.ge.f32.partialorder %v471, %v1311
        %vm1398 = vcmp.ge.f32.partialorder %v473, %v1311
        %vm1399 = vcmp.ge.f32.partialorder %v477, %v1314
        %vm1400 = vcmp.ge.f32.partialorder %v479, %v1314
        %vm1401 = vcmp.ge.f32.partialorder %v483, %v1317
        %vm1402 = vcmp.ge.f32.partialorder %v485, %v1317
        %vm1403 = vcmp.ge.f32.partialorder %v489, %v1320
        %vm1404 = vcmp.ge.f32.partialorder %v491, %v1320
        %vm1405 = vcmp.ge.f32.partialorder %v495, %v1323
        %vm1406 = vcmp.ge.f32.partialorder %v497, %v1323
        %vm1407 = vcmp.ge.f32.partialorder %v501, %v1326
        %vm1408 = vcmp.ge.f32.partialorder %v503, %v1326
        %vm1409 = vcmp.ge.f32.partialorder %v507, %v1329
        %vm1410 = vcmp.ge.f32.partialorder %v509, %v1329
        %vm1411 = vcmp.ge.f32.partialorder %v513, %v1332
        %vm1412 = vcmp.ge.f32.partialorder %v515, %v1332
        %vm1413 = vcmp.ge.f32.partialorder %v519, %v1335
        %vm1414 = vcmp.ge.f32.partialorder %v521, %v1335
        %vm1415 = vcmp.ge.f32.partialorder %v525, %v1338
        %vm1416 = vcmp.ge.f32.partialorder %v527, %v1338
        %vm1417 = vcmp.ge.f32.partialorder %v531, %v1341
        %vm1418 = vcmp.ge.f32.partialorder %v533, %v1341
        %vm1419 = vcmp.ge.f32.partialorder %v537, %v1344
        %vm1420 = vcmp.ge.f32.partialorder %v539, %v1344
        %vm1421 = vcmp.ge.f32.partialorder %v543, %v1347
        %vm1422 = vcmp.ge.f32.partialorder %v545, %v1347
        %vm1423 = vcmp.ge.f32.partialorder %v549, %v1350
        %vm1424 = vcmp.ge.f32.partialorder %v551, %v1350
        %vm1425 = vcmp.ge.f32.partialorder %v555, %v1353
        %vm1426 = vcmp.ge.f32.partialorder %v557, %v1353
        %vm1427 = vcmp.ge.f32.partialorder %v561, %v1356
        %vm1428 = vcmp.ge.f32.partialorder %v563, %v1356
        %vm1429 = vcmp.ge.f32.partialorder %v567, %v1359
        %vm1430 = vcmp.ge.f32.partialorder %v569, %v1359
        %vm1431 = vcmp.ge.f32.partialorder %v573, %v1362
        %vm1432 = vcmp.ge.f32.partialorder %v575, %v1362
        %vm1433 = vcmp.ge.f32.partialorder %v579, %v1365
        %vm1434 = vcmp.ge.f32.partialorder %v581, %v1365
        %vm1435 = vcmp.ge.f32.partialorder %v585, %v1368
        %vm1436 = vcmp.ge.f32.partialorder %v587, %v1368
        %vm1437 = vcmp.ge.f32.partialorder %v591, %v1371
        %vm1438 = vcmp.ge.f32.partialorder %v593, %v1371
        %vm1439 = vcmp.ge.f32.partialorder %v597, %v1374
        %vm1440 = vcmp.ge.f32.partialorder %v599, %v1374
        %vm1441 = vcmp.ge.f32.partialorder %v603, %v1377
        %vm1442 = vcmp.ge.f32.partialorder %v605, %v1377
        %vm1443 = vcmp.ge.f32.partialorder %v609, %v1380
        %vm1444 = vcmp.ge.f32.partialorder %v611, %v1380
        %v1445 = vsub.f32 %v423, %v615
        %v1446 = vsub.f32 %v425, %v615
        %v1447 = vsub.f32 %v429, %v618
        %v1448 = vsub.f32 %v431, %v618
        %v1449 = vsub.f32 %v435, %v621
        %v1450 = vsub.f32 %v437, %v621
        %v1451 = vsub.f32 %v441, %v624
        %v1452 = vsub.f32 %v443, %v624
        %v1453 = vsub.f32 %v447, %v627
        %v1454 = vsub.f32 %v449, %v627
        %v1455 = vsub.f32 %v453, %v630
        %v1456 = vsub.f32 %v455, %v630
        %v1457 = vsub.f32 %v459, %v633
        %v1458 = vsub.f32 %v461, %v633
        %v1459 = vsub.f32 %v465, %v636
        %v1460 = vsub.f32 %v467, %v636
        %v1461 = vsub.f32 %v471, %v639
        %v1462 = vsub.f32 %v473, %v639
        %v1463 = vsub.f32 %v477, %v642
        %v1464 = vsub.f32 %v479, %v642
        %v1465 = vsub.f32 %v483, %v645
        %v1466 = vsub.f32 %v485, %v645
        %v1467 = vsub.f32 %v489, %v648
        %v1468 = vsub.f32 %v491, %v648
        %v1469 = vsub.f32 %v495, %v651
        %v1470 = vsub.f32 %v497, %v651
        %v1471 = vsub.f32 %v501, %v654
        %v1472 = vsub.f32 %v503, %v654
        %v1473 = vsub.f32 %v507, %v657
        %v1474 = vsub.f32 %v509, %v657
        %v1475 = vsub.f32 %v513, %v660
        %v1476 = vsub.f32 %v515, %v660
        %v1477 = vsub.f32 %v519, %v663
        %v1478 = vsub.f32 %v521, %v663
        %v1479 = vsub.f32 %v525, %v666
        %v1480 = vsub.f32 %v527, %v666
        %v1481 = vsub.f32 %v531, %v669
        %v1482 = vsub.f32 %v533, %v669
        %v1483 = vsub.f32 %v537, %v672
        %v1484 = vsub.f32 %v539, %v672
        %v1485 = vsub.f32 %v543, %v675
        %v1486 = vsub.f32 %v545, %v675
        %v1487 = vsub.f32 %v549, %v678
        %v1488 = vsub.f32 %v551, %v678
        %v1489 = vsub.f32 %v555, %v681
        %v1490 = vsub.f32 %v557, %v681
        %v1491 = vsub.f32 %v561, %v684
        %v1492 = vsub.f32 %v563, %v684
        %v1493 = vsub.f32 %v567, %v687
        %v1494 = vsub.f32 %v569, %v687
        %v1495 = vsub.f32 %v573, %v690
        %v1496 = vsub.f32 %v575, %v690
        %v1497 = vsub.f32 %v579, %v693
        %v1498 = vsub.f32 %v581, %v693
        %v1499 = vsub.f32 %v585, %v696
        %v1500 = vsub.f32 %v587, %v696
        %v1501 = vsub.f32 %v591, %v699
        %v1502 = vsub.f32 %v593, %v699
        %v1503 = vsub.f32 %v597, %v702
        %v1504 = vsub.f32 %v599, %v702
        %v1505 = vsub.f32 %v603, %v705
        %v1506 = vsub.f32 %v605, %v705
        %v1507 = vsub.f32 %v609, %v708
        %v1508 = vsub.f32 %v611, %v708
        %v1509 = vmul.f32 %v1445, 1.442695
        %v1510 = vpow.pop %v1509
        %v1511 = vmul.f32 %v1446, 1.442695
        %v1512 = vpow.pop %v1511
        %v1513 = vmul.f32 %v1447, 1.442695
        %v1514 = vpow.pop %v1513
        %v1515 = vmul.f32 %v1448, 1.442695
        %v1516 = vpow.pop %v1515
        %v1517 = vmul.f32 %v1449, 1.442695
        %v1518 = vpow.pop %v1517
        %v1519 = vmul.f32 %v1450, 1.442695
        %v1520 = vpow.pop %v1519
        %v1521 = vmul.f32 %v1451, 1.442695
        %v1522 = vpow.pop %v1521
        %v1523 = vmul.f32 %v1452, 1.442695
        %v1524 = vpow.pop %v1523
        %v1525 = vmul.f32 %v1453, 1.442695
        %v1526 = vpow.pop %v1525
        %v1527 = vmul.f32 %v1454, 1.442695
        %v1528 = vpow.pop %v1527
        %v1529 = vmul.f32 %v1455, 1.442695
        %v1530 = vpow.pop %v1529
        %v1531 = vmul.f32 %v1456, 1.442695
        %v1532 = vpow.pop %v1531
        %v1533 = vmul.f32 %v1457, 1.442695
        %v1534 = vpow.pop %v1533
        %v1535 = vmul.f32 %v1458, 1.442695
        %v1536 = vpow.pop %v1535
        %v1537 = vmul.f32 %v1459, 1.442695
        %v1538 = vpow.pop %v1537
        %v1539 = vmul.f32 %v1460, 1.442695
        %v1540 = vpow.pop %v1539
        %v1541 = vmul.f32 %v1461, 1.442695
        %v1542 = vpow.pop %v1541
        %v1543 = vmul.f32 %v1462, 1.442695
        %v1544 = vpow.pop %v1543
        %v1545 = vmul.f32 %v1463, 1.442695
        %v1546 = vpow.pop %v1545
        %v1547 = vmul.f32 %v1464, 1.442695
        %v1548 = vpow.pop %v1547
        %v1549 = vmul.f32 %v1465, 1.442695
        %v1550 = vpow.pop %v1549
        %v1551 = vmul.f32 %v1466, 1.442695
        %v1552 = vpow.pop %v1551
        %v1553 = vmul.f32 %v1467, 1.442695
        %v1554 = vpow.pop %v1553
        %v1555 = vmul.f32 %v1468, 1.442695
        %v1556 = vpow.pop %v1555
        %v1557 = vmul.f32 %v1469, 1.442695
        %v1558 = vpow.pop %v1557
        %v1559 = vmul.f32 %v1470, 1.442695
        %v1560 = vpow.pop %v1559
        %v1561 = vmul.f32 %v1471, 1.442695
        %v1562 = vpow.pop %v1561
        %v1563 = vmul.f32 %v1472, 1.442695
        %v1564 = vpow.pop %v1563
        %v1565 = vmul.f32 %v1473, 1.442695
        %v1566 = vpow.pop %v1565
        %v1567 = vmul.f32 %v1474, 1.442695
        %v1568 = vpow.pop %v1567
        %v1569 = vmul.f32 %v1475, 1.442695
        %v1570 = vpow.pop %v1569
        %v1571 = vmul.f32 %v1476, 1.442695
        %v1572 = vpow.pop %v1571
        %v1573 = vmul.f32 %v1477, 1.442695
        %v1574 = vpow.pop %v1573
        %v1575 = vmul.f32 %v1478, 1.442695
        %v1576 = vpow.pop %v1575
        %v1577 = vmul.f32 %v1479, 1.442695
        %v1578 = vpow.pop %v1577
        %v1579 = vmul.f32 %v1480, 1.442695
        %v1580 = vpow.pop %v1579
        %v1581 = vmul.f32 %v1481, 1.442695
        %v1582 = vpow.pop %v1581
        %v1583 = vmul.f32 %v1482, 1.442695
        %v1584 = vpow.pop %v1583
        %v1585 = vmul.f32 %v1483, 1.442695
        %v1586 = vpow.pop %v1585
        %v1587 = vmul.f32 %v1484, 1.442695
        %v1588 = vpow.pop %v1587
        %v1589 = vmul.f32 %v1485, 1.442695
        %v1590 = vpow.pop %v1589
        %v1591 = vmul.f32 %v1486, 1.442695
        %v1592 = vpow.pop %v1591
        %v1593 = vmul.f32 %v1487, 1.442695
        %v1594 = vpow.pop %v1593
        %v1595 = vmul.f32 %v1488, 1.442695
        %v1596 = vpow.pop %v1595
        %v1597 = vmul.f32 %v1489, 1.442695
        %v1598 = vpow.pop %v1597
        %v1599 = vmul.f32 %v1490, 1.442695
        %v1600 = vpow.pop %v1599
        %v1601 = vmul.f32 %v1491, 1.442695
        %v1602 = vpow.pop %v1601
        %v1603 = vmul.f32 %v1492, 1.442695
        %v1604 = vpow.pop %v1603
        %v1605 = vmul.f32 %v1493, 1.442695
        %v1606 = vpow.pop %v1605
        %v1607 = vmul.f32 %v1494, 1.442695
        %v1608 = vpow.pop %v1607
        %v1609 = vmul.f32 %v1495, 1.442695
        %v1610 = vpow.pop %v1609
        %v1611 = vmul.f32 %v1496, 1.442695
        %v1612 = vpow.pop %v1611
        %v1613 = vmul.f32 %v1497, 1.442695
        %v1614 = vpow.pop %v1613
        %v1615 = vmul.f32 %v1498, 1.442695
        %v1616 = vpow.pop %v1615
        %v1617 = vmul.f32 %v1499, 1.442695
        %v1618 = vpow.pop %v1617
        %v1619 = vmul.f32 %v1500, 1.442695
        %v1620 = vpow.pop %v1619
        %v1621 = vmul.f32 %v1501, 1.442695
        %v1622 = vpow.pop %v1621
        %v1623 = vmul.f32 %v1502, 1.442695
        %v1624 = vpow.pop %v1623
        %v1625 = vmul.f32 %v1503, 1.442695
        %v1626 = vpow.pop %v1625
        %v1627 = vmul.f32 %v1504, 1.442695
        %v1628 = vpow.pop %v1627
        %v1629 = vmul.f32 %v1505, 1.442695
        %v1630 = vpow.pop %v1629
        %v1631 = vmul.f32 %v1506, 1.442695
        %v1632 = vpow.pop %v1631
        %v1633 = vmul.f32 %v1507, 1.442695
        %v1634 = vpow.pop %v1633
        %v1635 = vmul.f32 %v1508, 1.442695
        %v1636 = vpow.pop %v1635
        %v1637 = vsel %vm1381, %v1510, 0.0
        %v1638 = vsel %vm1382, %v1512, 0.0
        %v1639 = vsel %vm1383, %v1514, 0.0
        %v1640 = vsel %vm1384, %v1516, 0.0
        %v1641 = vsel %vm1385, %v1518, 0.0
        %v1642 = vsel %vm1386, %v1520, 0.0
        %v1643 = vsel %vm1387, %v1522, 0.0
        %v1644 = vsel %vm1388, %v1524, 0.0
        %v1645 = vsel %vm1389, %v1526, 0.0
        %v1646 = vsel %vm1390, %v1528, 0.0
        %v1647 = vsel %vm1391, %v1530, 0.0
        %v1648 = vsel %vm1392, %v1532, 0.0
        %v1649 = vsel %vm1393, %v1534, 0.0
        %v1650 = vsel %vm1394, %v1536, 0.0
        %v1651 = vsel %vm1395, %v1538, 0.0
        %v1652 = vsel %vm1396, %v1540, 0.0
        %v1653 = vsel %vm1397, %v1542, 0.0
        %v1654 = vsel %vm1398, %v1544, 0.0
        %v1655 = vsel %vm1399, %v1546, 0.0
        %v1656 = vsel %vm1400, %v1548, 0.0
        %v1657 = vsel %vm1401, %v1550, 0.0
        %v1658 = vsel %vm1402, %v1552, 0.0
        %v1659 = vsel %vm1403, %v1554, 0.0
        %v1660 = vsel %vm1404, %v1556, 0.0
        %v1661 = vsel %vm1405, %v1558, 0.0
        %v1662 = vsel %vm1406, %v1560, 0.0
        %v1663 = vsel %vm1407, %v1562, 0.0
        %v1664 = vsel %vm1408, %v1564, 0.0
        %v1665 = vsel %vm1409, %v1566, 0.0
        %v1666 = vsel %vm1410, %v1568, 0.0
        %v1667 = vsel %vm1411, %v1570, 0.0
        %v1668 = vsel %vm1412, %v1572, 0.0
        %v1669 = vsel %vm1413, %v1574, 0.0
        %v1670 = vsel %vm1414, %v1576, 0.0
        %v1671 = vsel %vm1415, %v1578, 0.0
        %v1672 = vsel %vm1416, %v1580, 0.0
        %v1673 = vsel %vm1417, %v1582, 0.0
        %v1674 = vsel %vm1418, %v1584, 0.0
        %v1675 = vsel %vm1419, %v1586, 0.0
        %v1676 = vsel %vm1420, %v1588, 0.0
        %v1677 = vsel %vm1421, %v1590, 0.0
        %v1678 = vsel %vm1422, %v1592, 0.0
        %v1679 = vsel %vm1423, %v1594, 0.0
        %v1680 = vsel %vm1424, %v1596, 0.0
        %v1681 = vsel %vm1425, %v1598, 0.0
        %v1682 = vsel %vm1426, %v1600, 0.0
        %v1683 = vsel %vm1427, %v1602, 0.0
        %v1684 = vsel %vm1428, %v1604, 0.0
        %v1685 = vsel %vm1429, %v1606, 0.0
        %v1686 = vsel %vm1430, %v1608, 0.0
        %v1687 = vsel %vm1431, %v1610, 0.0
        %v1688 = vsel %vm1432, %v1612, 0.0
        %v1689 = vsel %vm1433, %v1614, 0.0
        %v1690 = vsel %vm1434, %v1616, 0.0
        %v1691 = vsel %vm1435, %v1618, 0.0
        %v1692 = vsel %vm1436, %v1620, 0.0
        %v1693 = vsel %vm1437, %v1622, 0.0
        %v1694 = vsel %vm1438, %v1624, 0.0
        %v1695 = vsel %vm1439, %v1626, 0.0
        %v1696 = vsel %vm1440, %v1628, 0.0
        %v1697 = vsel %vm1441, %v1630, 0.0
        %v1698 = vsel %vm1442, %v1632, 0.0
        %v1699 = vsel %vm1443, %v1634, 0.0
        %v1700 = vsel %vm1444, %v1636, 0.0
        %v1701 = vpack.c.bf16 %v1639, %v1637
        %v1702 = vpack.c.bf16 %v1640, %v1638
        %v1703 = vpack.c.bf16 %v1643, %v1641
        %v1704 = vpack.c.bf16 %v1644, %v1642
        %v1705 = vpack.c.bf16 %v1647, %v1645
        %v1706 = vpack.c.bf16 %v1648, %v1646
        %v1707 = vpack.c.bf16 %v1651, %v1649
        %v1708 = vpack.c.bf16 %v1652, %v1650
        %v1709 = vpack.c.bf16 %v1655, %v1653
        %v1710 = vpack.c.bf16 %v1656, %v1654
        %v1711 = vpack.c.bf16 %v1659, %v1657
        %v1712 = vpack.c.bf16 %v1660, %v1658
        %v1713 = vpack.c.bf16 %v1663, %v1661
        %v1714 = vpack.c.bf16 %v1664, %v1662
        %v1715 = vpack.c.bf16 %v1667, %v1665
        %v1716 = vpack.c.bf16 %v1668, %v1666
        %v1717 = vpack.c.bf16 %v1671, %v1669
        %v1718 = vpack.c.bf16 %v1672, %v1670
        %v1719 = vpack.c.bf16 %v1675, %v1673
        %v1720 = vpack.c.bf16 %v1676, %v1674
        %v1721 = vpack.c.bf16 %v1679, %v1677
        %v1722 = vpack.c.bf16 %v1680, %v1678
        %v1723 = vpack.c.bf16 %v1683, %v1681
        %v1724 = vpack.c.bf16 %v1684, %v1682
        %v1725 = vpack.c.bf16 %v1687, %v1685
        %v1726 = vpack.c.bf16 %v1688, %v1686
        %v1727 = vpack.c.bf16 %v1691, %v1689
        %v1728 = vpack.c.bf16 %v1692, %v1690
        %v1729 = vpack.c.bf16 %v1695, %v1693
        %v1730 = vpack.c.bf16 %v1696, %v1694
        %v1731 = vpack.c.bf16 %v1699, %v1697
        %v1732 = vpack.c.bf16 %v1700, %v1698
        %v1734 = vunpack.c.l.b16 %v178
        %v1735 = vunpack.c.h.b16 %v178
        %v1736 = vpack.c.b16 %v1734, %v1734
        %v1737 = vpack.c.b16 %v1735, %v1735
        %1740 = vmatprep.subr.bf16.mxu0 %v1716
        %1741 = vmatpush1.bf16.xpose.msra.mxu0 %v1715
        %1742 = vmatprep.subr.bf16.mxu0 %v1714
        %1743 = vmatpush1.bf16.xpose.msra.mxu0 %v1713
        %1744 = vmatprep.subr.bf16.mxu0 %v1712
        %1745 = vmatpush1.bf16.xpose.msra.mxu0 %v1711
        %1746 = vmatprep.subr.bf16.mxu0 %v1710
        %1747 = vmatpush1.bf16.xpose.msra.mxu0 %v1709
        %1748 = vmatprep.subr.bf16.mxu0 %v1708
        %1749 = vmatpush1.bf16.xpose.msra.mxu0 %v1707
        %1750 = vmatprep.subr.bf16.mxu0 %v1706
        %1751 = vmatpush1.bf16.xpose.msra.mxu0 %v1705
        %1752 = vmatprep.subr.bf16.mxu0 %v1704
        %1753 = vmatpush1.bf16.xpose.msra.mxu0 %v1703
        %1754 = vmatprep.subr.bf16.mxu0 %v1702
        %1755 = vmatpush1.bf16.xpose.msra.mxu0 %v1701
        %1756 = vmatprep.subr.bf16.mxu0 %v1732
        %1757 = vmatpush2.bf16.xpose.msra.mxu0 %v1731
        %1758 = vmatprep.subr.bf16.mxu0 %v1730
        %1759 = vmatpush2.bf16.xpose.msra.mxu0 %v1729
        %1760 = vmatprep.subr.bf16.mxu0 %v1728
        %1761 = vmatpush2.bf16.xpose.msra.mxu0 %v1727
        %1762 = vmatprep.subr.bf16.mxu0 %v1726
        %1763 = vmatpush2.bf16.xpose.msra.mxu0 %v1725
        %1764 = vmatprep.subr.bf16.mxu0 %v1724
        %1765 = vmatpush2.bf16.xpose.msra.mxu0 %v1723
        %1766 = vmatprep.subr.bf16.mxu0 %v1722
        %1767 = vmatpush2.bf16.xpose.msra.mxu0 %v1721
        %1768 = vmatprep.subr.bf16.mxu0 %v1720
        %1769 = vmatpush2.bf16.xpose.msra.mxu0 %v1719
        %1770 = vmatprep.subr.bf16.mxu0 %v1718
        %1771 = vmatpush2.bf16.xpose.msra.mxu0 %v1717
        %1772 = vmatprep.mubr.bf16.mxu0 %v1737
        %1773 = vmatmul.mubr.bf16.gmra.mxu0 %v1736
        %v1774 = vpop.f32.mrf.mxu0
        %v1775 = vadd.f32 0.0, %v1774
        %v1776 = vpop.f32.mrf.mxu0
        %v1777 = vadd.f32 0.0, %v1776
        %v1778 = vpop.f32.mrf.mxu0
        %v1779 = vpop.f32.mrf.mxu0
        %1780 = vdwg.mxu0
        %v1781 = vrcp.pop %v1775
        %v1782 = vrcp.pop %v1777
        %v1783 = vlaneseq
        %v1784 = vshrl.u32 %v1783, 7
        %v1785 = vsub.s32 4, %v1784
        %v1786 = vrot.slane %v1781, %v1785
        %v1787 = vlaneseq
        %v1788 = vshrl.u32 %v1787, 7
        %v1789 = vsub.s32 4, %v1788
        %v1790 = vrot.slane %v1782, %v1789
        %v1791 = vmul.f32 %v1775, %v1786
        %v1792 = vmul.f32 %v1777, %v1790
        %v1795 = vcombine.low %v1791, %v1792
        %1797 = vst [vmem:[%s165] sm:$0xff] %v1795
        %s1798 = sand.u32 %s90, 1
        %s1799 = scalar_lea.sflag [#allocation3], %s1798
        %s1800 = sand.u32 %s90, 1
        %s1801 = smul.addr %s1800, 8
        %s1802 = scalar_lea.vmem [#allocation2], %s1801
        // Predicated region
        $region29: #{tpu_custom_call.1} parent=27 // pred_check
          %p1803 = pneg %p100
        $region30: #{tpu_custom_call.1} parent=27 // pred_check_branch
          %1805 = sbr.rel (%p1803) target = $region32
        $region31: #{tpu_custom_call.1} parent=27 // pred_region
          %s1806 = smul.u32 2, %s21
          %s1808 = ssub.s32 128, 128
          %1809 = vsyncadd %s1799, %s1808
          %s1810 = smul.addr %s20, 2
          %s1811 = sadd.s32 %s1806, %s1810
          %s1812 = smul.addr %s1811, 64
          %s1813 = scalar_lea.hbm %s2, %s1812
          %s1815 = sshll.u32 %s1802, 4
          %s1816 = int_to_ptr.vmem [resolvable:$true] %s1815
          %1818 = dma.vmem_to_hbm [thread:$0]  %s1816, 128, %s1813, %s1799
        $region32: #{tpu_custom_call.1} parent=27 // pred_fallthru
          _
      $region28: #{tpu_custom_call.1} parent=5 // pred_fallthru
        _
      %p1819 = scmp.le.s32.totalorder 2, %s11
      // Predicated region
      $region33: #{tpu_custom_call.1} parent=5 // pred_check
        %p1820 = pneg %p1819
      $region34: #{tpu_custom_call.1} parent=5 // pred_check_branch
        %1822 = sbr.rel (%p1820) target = $region36
      $region35: #{tpu_custom_call.1} parent=5 // pred_region
        %s1823 = ssub.s32 %s11, 2
        // Predicated region
        $region37: #{tpu_custom_call.1} parent=35 // pred_check
          %p1824 = pneg %p106
        $region38: #{tpu_custom_call.1} parent=35 // pred_check_branch
          %1826 = sbr.rel (%p1824) target = $region40
        $region39: #{tpu_custom_call.1} parent=35 // pred_region
          %s1827 = sand.u32 %s91, 1
          %s1828 = scalar_lea.sflag [#allocation3], %s1827
          %s1829 = sand.u32 %s91, 1
          %s1830 = smul.addr %s1829, 8
          %s1831 = scalar_lea.vmem [#allocation2], %s1830
          %1832 = dma.done %s1828, 128
        $region40: #{tpu_custom_call.1} parent=35 // pred_fallthru
          _
      $region36: #{tpu_custom_call.1} parent=5 // pred_fallthru
        _
    $region6: #{tpu_custom_call.1} parent=1 // loop_footer
      %s15 = sadd.s32 1, %s11
    $region7: #{tpu_custom_call.1} parent=1 // loop_footer_branch
      %10 = sbr.rel target = $region3
    $region8: #{tpu_custom_call.1} parent=1 // loop_exit
      _
    %1833 = vsyncpa [#allocation3], 1
    %s1834 = scalar_lea.sflag [#allocation3], 1
    %1835 = vsyncpa %s1834, 1

</llo_original>
